<compile_context>
chip_gen: v6e
topology: v6e:2x2x1
jax: 0.10.0
libtpu: 0.0.40
codegen_flags: <defaults>
</compile_context>

<pallas_src>
import functools

import jax
import jax.numpy as jnp
import numpy as np
from jax.experimental import pallas as pl
from jax.experimental.pallas import tpu as pltpu


def rectified_flow_kernel(x_ref, z_ref, t_ref, w_ref, psum_ref):
    """One weight-column tile of the fused rectified-flow loss.

    x_ref, z_ref : (B, N)   f32 activations, resident across grid steps
    t_ref        : (B, 1)   f32 per-sample time
    w_ref        : (N, TN)  bf16 column tile of the stand-in net weights
    psum_ref     : (1, TN)  f32 per-column partial sum of squared errors
    """
    tn = w_ref.shape[1]

    # Full activations are needed for the contraction over the feature axis.
    x = x_ref[...]                       # elementwise math stays f32 (v5e: no bf16 VPU)
    z = z_ref[...]
    t = t_ref[...]                       # (B, 1) broadcasts over features

    xn = x * 2.0 - 1.0                   # normalize_to_neg1_1
    z_t = (1.0 - t) * xn + t * z         # interpolate toward noise
    # TODO(synk): at B>=128 / multi-K-step grids, cache z_t (bf16) in VMEM scratch
    # instead of recomputing it per grid step.

    # Stand-in "net": bf16 operands into the MXU, f32 accumulate.
    v_t = jnp.dot(z_t.astype(jnp.bfloat16), w_ref[...],
                  preferred_element_type=jnp.float32) * 0.01 + t      # (B, TN)

    # Column block of the velocity target matching this weight tile.
    col0 = pl.multiple_of(pl.program_id(0) * tn, tn)
    x_blk = x_ref[:, pl.ds(col0, tn)]
    z_blk = z_ref[:, pl.ds(col0, tn)]
    target = z_blk - (x_blk * 2.0 - 1.0)

    diff = target - v_t
    # Lane-dense partial reduction; the final mean happens outside the kernel.
    psum_ref[...] = jnp.sum(diff * diff, axis=0, keepdims=True)


@functools.partial(jax.jit, static_argnames=("tn",))
def rectified_flow_loss(x_nchw, z_nchw, t, w_bf16, *, tn=512):
    """x_nchw, z_nchw: [B, C, H, W] f32; t: [B] f32; w_bf16: [N, N] bfloat16.

    Weights must already be stored as bfloat16 (persistent) -- the cast is NOT
    performed here, so the kernel's W read is the only W HBM traffic.
    """
    assert w_bf16.dtype == jnp.bfloat16, "store/ship the net weights as bf16"
    B = x_nchw.shape[0]
    N = int(np.prod(x_nchw.shape[1:]))
    assert w_bf16.shape == (N, N)
    assert N % tn == 0 and tn % 128 == 0, (N, tn)

    x2d = x_nchw.reshape(B, N).astype(jnp.float32)
    z2d = z_nchw.reshape(B, N).astype(jnp.float32)
    t2d = t.reshape(B, 1).astype(jnp.float32)

    cost = pl.CostEstimate(
        flops=2 * B * N * N,
        transcendentals=0,
        bytes_accessed=N * N * 2 + 2 * B * N * 4 + B * 4 + N * 4,
    )

    partials = pl.pallas_call(
        rectified_flow_kernel,
        out_shape=jax.ShapeDtypeStruct((1, N), jnp.float32),
        grid_spec=pltpu.PrefetchScalarGridSpec(
            num_scalar_prefetch=0,
            grid=(N // tn,),                               # 2 tiles: one per TC on v7x
            in_specs=[
                pl.BlockSpec((B, N), lambda j: (0, 0)),    # x (tiny, stays resident)
                pl.BlockSpec((B, N), lambda j: (0, 0)),    # z
                pl.BlockSpec((B, 1), lambda j: (0, 0)),    # t
                pl.BlockSpec((N, tn), lambda j: (0, j)),   # w column tile (streamed)
            ],
            out_specs=pl.BlockSpec((1, tn), lambda j: (0, j)),
        ),
        compiler_params=pltpu.CompilerParams(
            dimension_semantics=("parallel",),             # shard tiles across TCs (v7x)
        ),
        cost_estimate=cost,
    )(x2d, z2d, t2d, w_bf16)

    return jnp.sum(partials) / (B * N)


def rectified_flow_loss_ref(x_nchw, z_nchw, t, w_bf16):
    """Pure-JAX reference mirroring the kernel's numerics (bf16 matmul, f32 math)."""
    B = x_nchw.shape[0]
    N = int(np.prod(x_nchw.shape[1:]))
    x2d = x_nchw.reshape(B, N).astype(jnp.float32)
    z2d = z_nchw.reshape(B, N).astype(jnp.float32)
    t2d = t.reshape(B, 1).astype(jnp.float32)
    xn = x2d * 2.0 - 1.0
    z_t = (1.0 - t2d) * xn + t2d * z2d
    v_t = jnp.dot(z_t.astype(jnp.bfloat16), w_bf16,
                  preferred_element_type=jnp.float32) * 0.01 + t2d
    target = z2d - xn
    return jnp.mean((target - v_t) ** 2)


if __name__ == "__main__":
    # Small shapes consistent with the module: batch=2, channels=4, image_size=16.
    B, C, H, W = 2, 4, 16, 16
    N = C * H * W  # 1024

    key = jax.random.PRNGKey(0)
    kx, kz, kt, kw = jax.random.split(key, 4)

    # Input image in [0, 1] (the module normalizes to [-1, 1] itself).
    x = jax.random.uniform(kx, (B, C, H, W), dtype=jnp.float32)
    # Random sampling done host-side (matches torch.randn_like / logit-normal t).
    z = jax.random.normal(kz, (B, C, H, W), dtype=jnp.float32)
    t = jax.nn.sigmoid(jax.random.normal(kt, (B,), dtype=jnp.float32))
    # Deterministic stand-in net weights, cast ONCE and held persistently in bf16.
    w_bf16 = jax.block_until_ready(
        (jax.random.normal(kw, (N, N), dtype=jnp.float32) * 0.02).astype(jnp.bfloat16))

    loss = jax.block_until_ready(rectified_flow_loss(x, z, t, w_bf16))
    loss_ref = jax.block_until_ready(rectified_flow_loss_ref(x, z, t, w_bf16))

    assert np.allclose(np.asarray(loss), np.asarray(loss_ref), rtol=1e-5, atol=1e-5), (
        loss, loss_ref)
    print("KERNEL_OK")
</pallas_src>

<mosaic_0001>
module attributes {stable_mosaic.version = 11 : i64} {
  func.func @rectified_flow_kernel(%arg0: i32, %arg1: memref<2x1024xf32, #tpu.memory_space<vmem>>, %arg2: memref<2x1024xf32, #tpu.memory_space<vmem>>, %arg3: memref<2x1xf32, #tpu.memory_space<vmem>>, %arg4: memref<1024x512xbf16, #tpu.memory_space<vmem>>, %arg5: memref<1x512xf32, #tpu.memory_space<vmem>>) attributes {dimension_semantics = [#tpu.dimension_semantics<parallel>], iteration_bounds = array<i64: 2>, scalar_prefetch = 0 : i64, scratch_operands = 0 : i64, tpu.core_type = #tpu.core_type<tc>, window_params = [{pipeline_mode = #tpu.pipeline_mode<synchronous>, transform_indices = @transform_0, window_bounds = array<i64: 2, 1024>}, {pipeline_mode = #tpu.pipeline_mode<synchronous>, transform_indices = @transform_1, window_bounds = array<i64: 2, 1024>}, {pipeline_mode = #tpu.pipeline_mode<synchronous>, transform_indices = @transform_2, window_bounds = array<i64: 2, 1>}, {transform_indices = @transform_3, window_bounds = array<i64: 1024, 512>}, {transform_indices = @transform_4, window_bounds = array<i64: 1, 512>}]} {
    %c0 = arith.constant 0 : index
    %c0_0 = arith.constant 0 : index
    %0 = vector.load %arg1[%c0, %c0_0] : memref<2x1024xf32, #tpu.memory_space<vmem>>, vector<2x1024xf32>
    %c0_1 = arith.constant 0 : index
    %c0_2 = arith.constant 0 : index
    %1 = vector.load %arg2[%c0_1, %c0_2] : memref<2x1024xf32, #tpu.memory_space<vmem>>, vector<2x1024xf32>
    %c0_3 = arith.constant 0 : index
    %c0_4 = arith.constant 0 : index
    %2 = vector.load %arg3[%c0_3, %c0_4] : memref<2x1xf32, #tpu.memory_space<vmem>>, vector<2x1xf32>
    %cst = arith.constant 2.000000e+00 : f32
    %3 = vector.broadcast %cst : f32 to vector<2x1024xf32>
    %4 = arith.mulf %0, %3 : vector<2x1024xf32>
    %cst_5 = arith.constant 1.000000e+00 : f32
    %5 = vector.broadcast %cst_5 : f32 to vector<2x1024xf32>
    %6 = arith.subf %4, %5 : vector<2x1024xf32>
    %cst_6 = arith.constant 1.000000e+00 : f32
    %7 = vector.broadcast %cst_6 : f32 to vector<2x1xf32>
    %8 = arith.subf %7, %2 : vector<2x1xf32>
    %9 = vector.broadcast %8 : vector<2x1xf32> to vector<2x1024xf32>
    %10 = arith.mulf %9, %6 : vector<2x1024xf32>
    %11 = vector.broadcast %2 : vector<2x1xf32> to vector<2x1024xf32>
    %12 = arith.mulf %11, %1 : vector<2x1024xf32>
    %13 = arith.addf %10, %12 : vector<2x1024xf32>
    %14 = arith.truncf %13 : vector<2x1024xf32> to vector<2x1024xbf16>
    %c0_7 = arith.constant 0 : index
    %c0_8 = arith.constant 0 : index
    %15 = vector.load %arg4[%c0_7, %c0_8] : memref<1024x512xbf16, #tpu.memory_space<vmem>>, vector<1024x512xbf16>
    %cst_9 = arith.constant dense<0.000000e+00> : vector<2x512xf32>
    %16 = tpu.matmul %14, %15, %cst_9 {dimension_numbers = #tpu.dot_dimension_numbers<[1], [0], [0], [1], [0, 0, 1, 1], [], []>} : vector<2x1024xbf16>, vector<1024x512xbf16>, vector<2x512xf32> -> vector<2x512xf32>
    %cst_10 = arith.constant 0.00999999977 : f32
    %17 = vector.broadcast %cst_10 : f32 to vector<2x512xf32>
    %18 = arith.mulf %16, %17 : vector<2x512xf32>
    %19 = vector.broadcast %2 : vector<2x1xf32> to vector<2x512xf32>
    %20 = arith.addf %18, %19 : vector<2x512xf32>
    %c512_i32 = arith.constant 512 : i32
    %21 = arith.muli %arg0, %c512_i32 : i32
    %22 = tpu.assume_multiple %21, 512 : i32
    %c0_11 = arith.constant 0 : index
    %23 = arith.index_cast %22 : i32 to index
    %24 = vector.load %arg1[%c0_11, %23] : memref<2x1024xf32, #tpu.memory_space<vmem>>, vector<2x512xf32>
    %c0_12 = arith.constant 0 : index
    %25 = arith.index_cast %22 : i32 to index
    %26 = vector.load %arg2[%c0_12, %25] : memref<2x1024xf32, #tpu.memory_space<vmem>>, vector<2x512xf32>
    %cst_13 = arith.constant 2.000000e+00 : f32
    %27 = vector.broadcast %cst_13 : f32 to vector<2x512xf32>
    %28 = arith.mulf %24, %27 : vector<2x512xf32>
    %cst_14 = arith.constant 1.000000e+00 : f32
    %29 = vector.broadcast %cst_14 : f32 to vector<2x512xf32>
    %30 = arith.subf %28, %29 : vector<2x512xf32>
    %31 = arith.subf %26, %30 : vector<2x512xf32>
    %32 = arith.subf %31, %20 : vector<2x512xf32>
    %33 = arith.mulf %32, %32 : vector<2x512xf32>
    %cst_15 = arith.constant dense<0.000000e+00> : vector<512xf32>
    %34 = vector.multi_reduction <add>, %33, %cst_15 [0] : vector<2x512xf32> to vector<512xf32>
    %35 = vector.shape_cast %34 : vector<512xf32> to vector<1x512xf32>
    %c0_16 = arith.constant 0 : index
    %c0_17 = arith.constant 0 : index
    %36 = vector.load %arg5[%c0_16, %c0_17] : memref<1x512xf32, #tpu.memory_space<vmem>>, vector<1x512xf32>
    tpu.vector_store %arg5[%c0_16, %c0_17], %35 {strides = array<i32>} : memref<1x512xf32, #tpu.memory_space<vmem>>, vector<1x512xf32>,
    return
  }
  func.func @transform_0(%arg0: i32) -> (i32, i32) {
    %c0_i32 = arith.constant 0 : i32
    %c0_i32_0 = arith.constant 0 : i32
    %c0_i32_1 = arith.constant 0 : i32
    return %c0_i32, %c0_i32_0 : i32, i32
  }
  func.func @transform_1(%arg0: i32) -> (i32, i32) {
    %c0_i32 = arith.constant 0 : i32
    %c0_i32_0 = arith.constant 0 : i32
    %c0_i32_1 = arith.constant 0 : i32
    return %c0_i32, %c0_i32_0 : i32, i32
  }
  func.func @transform_2(%arg0: i32) -> (i32, i32) {
    %c0_i32 = arith.constant 0 : i32
    %c0_i32_0 = arith.constant 0 : i32
    %c0_i32_1 = arith.constant 0 : i32
    return %c0_i32, %c0_i32_0 : i32, i32
  }
  func.func @transform_3(%arg0: i32) -> (i32, i32) {
    %c0_i32 = arith.constant 0 : i32
    %c0_i32_0 = arith.constant 0 : i32
    return %c0_i32, %arg0 : i32, i32
  }
  func.func @transform_4(%arg0: i32) -> (i32, i32) {
    %c0_i32 = arith.constant 0 : i32
    %c0_i32_0 = arith.constant 0 : i32
    return %c0_i32, %arg0 : i32, i32
  }
}

</mosaic_0001>

<llo_original>
// kernel: rectified_flow_loss.1
$region0: #{rectified_flow_loss.1}
  #allocation0 [shape = 'u32[]', space=smem, size = 0x4, offset = 0x4, fixed_abs, tag = 'smem constant byte address 0x4 - core index']
  #allocation1 [shape = 'u32[144,128]{1,0:T(1,128)}', space=vmem, size = 0x12000, scoped, tag = 'internal scratch']
  %s0 = inlined_call_operand.vmem [shape: f32[2,1024], index: 0, kind: input, shape index: {}]
  %s1 = inlined_call_operand.vmem [shape: f32[2,1024], index: 1, kind: input, shape index: {}]
  %s2 = inlined_call_operand.vmem [shape: f32[2,1], index: 2, kind: input, shape index: {}]
  %s3 = inlined_call_operand.hbm [shape: bf16[1024,1024], index: 3, kind: input, shape index: {}]
  %s4 = inlined_call_operand.vmem [shape: f32[1,1024], index: 4, kind: output, shape index: {}]
  %s5 = sld [smem:[#allocation0]]
  $region53: #{rectified_flow_loss.1} parent=0
    _
  %s7 = ssub.s32 1, %s5
  %s8 = scalar_select 0, %s7, %s5
  $region1: #{rectified_flow_loss.1} parent=0
    #allocation2 [shape = 'u8[2097152]{0}', space=vmem, size = 0x200000, scoped, tag = 'input window, operand 3']
    #allocation3 [shape = 's32[2]{0}', space=sflag, size = 0x8, scoped, tag = 'scoped memory for rectified_flow_loss.1']
    %9 = vsyncpa [#allocation3], 0
    %s10 = scalar_lea.sflag [#allocation3], 1
    %11 = vsyncpa %s10, 0
    loop: start=0, step=1, limit=4
    $region2: #{rectified_flow_loss.1} parent=1 // loop_pre_header
      _
    $region3: #{rectified_flow_loss.1} parent=1 // loop_header
      %s13 = sphi 0, %s17
      %p14 = scmp.ge.s32.totalorder %s13, 4
      %s21 = sphi 0, %s21
      %s23 = sphi 0, %s21
      %s24 = sphi 0, %s23
      %s38 = sphi 0, %s24
      %s42 = sphi 0, %s42
      %s44 = sphi 0, %s42
      %s45 = sphi 0, %s44
      %s59 = sphi 0, %s45
      %s63 = sphi 0, %s63
      %s65 = sphi 0, %s63
      %s66 = sphi 0, %s65
      %s80 = sphi 0, %s66
      %s86 = sphi 0, %s88
      %s89 = sphi 0, %s86
      %s90 = sphi 0, %s89
      %s106 = sphi 0, %s90
      %s112 = sphi 0, %s114
      %s115 = sphi 0, %s112
      %s116 = sphi 0, %s115
      %s132 = sphi 0, %s116
    $region4: #{rectified_flow_loss.1} parent=1 // loop_header_branch
      %16 = sbr.rel (%p14) target = $region8
    $region5: #{rectified_flow_loss.1} parent=1 // loop_body
      %s18 = ssub.s32 %s13, 1
      %s19 = ssub.s32 %s13, 2
      %s20 = sadd.s32 %s13, 1
      %s22 = sadd.s32 %s21, 1
      %p25 = scmp.eq.s32.totalorder %s13, 1
      %p26 = scmp.ne.s32.totalorder %s21, %s23
      %p27 = scmp.eq.s32.totalorder %s13, 0
      %p28 = por %p26, %p27
      %p29 = scmp.ne.s32.totalorder %s21, %s23
      %p30 = scmp.eq.s32.totalorder %s18, 1
      %p31 = por %p29, %p30
      %p32 = scmp.ne.s32.totalorder %s23, %s24
      %p33 = scmp.eq.s32.totalorder %s18, 0
      %p34 = por %p32, %p33
      %p35 = scmp.ne.s32.totalorder %s23, %s24
      %p36 = scmp.eq.s32.totalorder %s19, 1
      %p37 = por %p35, %p36
      %p39 = scmp.ne.s32.totalorder %s24, %s38
      %p40 = scmp.eq.s32.totalorder %s19, 0
      %p41 = por %p39, %p40
      %s43 = sadd.s32 %s42, 1
      %p46 = scmp.eq.s32.totalorder %s13, 1
      %p47 = scmp.ne.s32.totalorder %s42, %s44
      %p48 = scmp.eq.s32.totalorder %s13, 0
      %p49 = por %p47, %p48
      %p50 = scmp.ne.s32.totalorder %s42, %s44
      %p51 = scmp.eq.s32.totalorder %s18, 1
      %p52 = por %p50, %p51
      %p53 = scmp.ne.s32.totalorder %s44, %s45
      %p54 = scmp.eq.s32.totalorder %s18, 0
      %p55 = por %p53, %p54
      %p56 = scmp.ne.s32.totalorder %s44, %s45
      %p57 = scmp.eq.s32.totalorder %s19, 1
      %p58 = por %p56, %p57
      %p60 = scmp.ne.s32.totalorder %s45, %s59
      %p61 = scmp.eq.s32.totalorder %s19, 0
      %p62 = por %p60, %p61
      %s64 = sadd.s32 %s63, 1
      %p67 = scmp.eq.s32.totalorder %s13, 1
      %p68 = scmp.ne.s32.totalorder %s63, %s65
      %p69 = scmp.eq.s32.totalorder %s13, 0
      %p70 = por %p68, %p69
      %p71 = scmp.ne.s32.totalorder %s63, %s65
      %p72 = scmp.eq.s32.totalorder %s18, 1
      %p73 = por %p71, %p72
      %p74 = scmp.ne.s32.totalorder %s65, %s66
      %p75 = scmp.eq.s32.totalorder %s18, 0
      %p76 = por %p74, %p75
      %p77 = scmp.ne.s32.totalorder %s65, %s66
      %p78 = scmp.eq.s32.totalorder %s19, 1
      %p79 = por %p77, %p78
      %p81 = scmp.ne.s32.totalorder %s66, %s80
      %p82 = scmp.eq.s32.totalorder %s19, 0
      %p83 = por %p81, %p82
      %s84 = ssub.s32 %s13, %s20
      %p85 = scmp.eq.s32.totalorder %s84, 0
      %s87 = sadd.s32 %s86, 1
      %s88 = scalar_select %p85, %s86, %s87
      %p91 = pneg %p85
      %p92 = scmp.eq.s32.totalorder %s13, 1
      %p93 = por %p91, %p92
      %p94 = scmp.ne.s32.totalorder %s86, %s89
      %p95 = scmp.eq.s32.totalorder %s13, 0
      %p96 = por %p94, %p95
      %p97 = scmp.ne.s32.totalorder %s86, %s89
      %p98 = scmp.eq.s32.totalorder %s18, 1
      %p99 = por %p97, %p98
      %p100 = scmp.ne.s32.totalorder %s89, %s90
      %p101 = scmp.eq.s32.totalorder %s18, 0
      %p102 = por %p100, %p101
      %p103 = scmp.ne.s32.totalorder %s89, %s90
      %p104 = scmp.eq.s32.totalorder %s19, 1
      %p105 = por %p103, %p104
      %p107 = scmp.ne.s32.totalorder %s90, %s106
      %p108 = scmp.eq.s32.totalorder %s19, 0
      %p109 = por %p107, %p108
      %s110 = ssub.s32 %s13, %s20
      %p111 = scmp.eq.s32.totalorder %s110, 0
      %s113 = sadd.s32 %s112, 1
      %s114 = scalar_select %p111, %s112, %s113
      %p117 = pneg %p111
      %p118 = scmp.eq.s32.totalorder %s13, 1
      %p119 = por %p117, %p118
      %p120 = scmp.ne.s32.totalorder %s112, %s115
      %p121 = scmp.eq.s32.totalorder %s13, 0
      %p122 = por %p120, %p121
      %p123 = scmp.ne.s32.totalorder %s112, %s115
      %p124 = scmp.eq.s32.totalorder %s18, 1
      %p125 = por %p123, %p124
      %p126 = scmp.ne.s32.totalorder %s115, %s116
      %p127 = scmp.eq.s32.totalorder %s18, 0
      %p128 = por %p126, %p127
      %p129 = scmp.ne.s32.totalorder %s115, %s116
      %p130 = scmp.eq.s32.totalorder %s19, 1
      %p131 = por %p129, %p130
      %p133 = scmp.ne.s32.totalorder %s116, %s132
      %p134 = scmp.eq.s32.totalorder %s19, 0
      %p135 = por %p133, %p134
      %p136 = scmp.le.s32.totalorder 1, %s13
      %p137 = scmp.lt.s32.totalorder %s13, 3
      %p138 = pnand %p136, %p137
      %p139 = pneg %p138
      // Predicated region
      $region9: #{rectified_flow_loss.1} parent=5 // pred_check
        _
      $region10: #{rectified_flow_loss.1} parent=5 // pred_check_branch
        %141 = sbr.rel (%p138) target = $region12
      $region11: #{rectified_flow_loss.1} parent=5 // pred_region
        %s142 = ssub.s32 %s13, 1
        // Predicated region
        $region13: #{rectified_flow_loss.1} parent=11 // pred_check
          %p143 = pneg %p34
        $region14: #{rectified_flow_loss.1} parent=11 // pred_check_branch
          %145 = sbr.rel (%p143) target = $region16
        $region15: #{rectified_flow_loss.1} parent=11 // pred_region
          _
        $region16: #{rectified_flow_loss.1} parent=11 // pred_fallthru
          _
        // Predicated region
        $region17: #{rectified_flow_loss.1} parent=11 // pred_check
          %p146 = pneg %p55
        $region18: #{rectified_flow_loss.1} parent=11 // pred_check_branch
          %148 = sbr.rel (%p146) target = $region20
        $region19: #{rectified_flow_loss.1} parent=11 // pred_region
          _
        $region20: #{rectified_flow_loss.1} parent=11 // pred_fallthru
          _
        // Predicated region
        $region21: #{rectified_flow_loss.1} parent=11 // pred_check
          %p149 = pneg %p76
        $region22: #{rectified_flow_loss.1} parent=11 // pred_check_branch
          %151 = sbr.rel (%p149) target = $region24
        $region23: #{rectified_flow_loss.1} parent=11 // pred_region
          _
        $region24: #{rectified_flow_loss.1} parent=11 // pred_fallthru
          _
      $region12: #{rectified_flow_loss.1} parent=5 // pred_fallthru
        _
      %p152 = scmp.lt.s32.totalorder %s13, 2
      // Predicated region
      $region25: #{rectified_flow_loss.1} parent=5 // pred_check
        %p153 = pneg %p152
      $region26: #{rectified_flow_loss.1} parent=5 // pred_check_branch
        %155 = sbr.rel (%p153) target = $region28
      $region27: #{rectified_flow_loss.1} parent=5 // pred_region
        // Predicated region
        $region29: #{rectified_flow_loss.1} parent=27 // pred_check
          %p156 = pneg %p96
        $region30: #{rectified_flow_loss.1} parent=27 // pred_check_branch
          %158 = sbr.rel (%p156) target = $region32
        $region31: #{rectified_flow_loss.1} parent=27 // pred_region
          %s159 = sand.u32 %s86, 1
          %s160 = scalar_lea.sflag [#allocation3], %s159
          %s161 = sand.u32 %s86, 1
          %s162 = smul.addr %s161, 2048
          %s163 = scalar_lea.vmem [#allocation2], %s162
          %s164 = smul.u32 4, %s13
          %s166 = ssub.s32 32768, 32768
          %167 = vsyncadd %s160, %s166
          %s168 = smul.addr %s164, 64
          %s169 = scalar_lea.hbm %s3, %s168
          %s170 = sshll.u32 %s163, 4
          %s171 = int_to_ptr.vmem [resolvable:$true] %s170
          %176 = dma.hbm_to_vmem [thread:$0]  %s169, 32768, %s171, %s160, 512, 256, 16
        $region32: #{rectified_flow_loss.1} parent=27 // pred_fallthru
          _
      $region28: #{rectified_flow_loss.1} parent=5 // pred_fallthru
        _
      %p177 = scmp.le.s32.totalorder 1, %s13
      %p178 = scmp.lt.s32.totalorder %s13, 3
      %p179 = pnand %p177, %p178
      %p180 = pneg %p179
      // Predicated region
      $region33: #{rectified_flow_loss.1} parent=5 // pred_check
        _
      $region34: #{rectified_flow_loss.1} parent=5 // pred_check_branch
        %182 = sbr.rel (%p179) target = $region36
      $region35: #{rectified_flow_loss.1} parent=5 // pred_region
        %s183 = ssub.s32 %s13, 1
        %s184 = sand.u32 %s89, 1
        %s185 = scalar_lea.sflag [#allocation3], %s184
        %s186 = sand.u32 %s89, 1
        %s187 = smul.addr %s186, 2048
        %s188 = scalar_lea.vmem [#allocation2], %s187
        // Predicated region
        $region37: #{rectified_flow_loss.1} parent=35 // pred_check
          %p189 = pneg %p102
        $region38: #{rectified_flow_loss.1} parent=35 // pred_check_branch
          %191 = sbr.rel (%p189) target = $region40
        $region39: #{rectified_flow_loss.1} parent=35 // pred_region
          %192 = dma.done %s185, 32768
        $region40: #{rectified_flow_loss.1} parent=35 // pred_fallthru
          _
        %p193 = pneg %p34
        %p194 = pneg %p31
        %p195 = pneg %p55
        %p196 = pneg %p52
        %p197 = pneg %p76
        %p198 = pneg %p73
        %s199 = sand.u32 %s89, 1
        %s200 = scalar_lea.sflag [#allocation3], %s199
        %s201 = sand.u32 %s89, 1
        %s202 = smul.addr %s201, 2048
        %s203 = scalar_lea.vmem [#allocation2], %s202
        %p204 = pneg %p102
        %p205 = pneg %p99
        %p206 = pneg %p128
        %p207 = pneg %p125
        %s208 = smul.u32 4, %s18
        %p209 = scmp.lt.s32.totalorder %s208, 7
        %s210 = scalar_select %p209, %s208, 7
        %s211 = scalar_lea.vmem %s4, %s210
        %s212 = smul.u32 4, %s18
        %s213 = smul.u32 4, %s18
        %p214 = scmp.lt.s32.totalorder %s213, 7
        %s215 = scalar_select %p214, %s213, 7
        %s216 = scalar_lea.vmem %s4, %s215
        %s217 = smul.u32 4, %s18
        %v218 = vld [vmem:[%s0] sm:$0xff]
        %v219 = vld [vmem:[%s0 + $0x8] sm:$0xff]
        %v220 = vld [vmem:[%s1] sm:$0xff]
        %v221 = vld [vmem:[%s1 + $0x8] sm:$0xff]
        %v222 = vld [vmem:[%s2] sm:$0x3]
        %v223 = vmul.f32 %v218, 2.0
        %v224 = vmul.f32 %v219, 2.0
        %v225 = vsub.f32 %v223, 1.0
        %v226 = vsub.f32 %v224, 1.0
        %v227 = vsub.f32 1.0, %v222
        %229 = vset.pattern.permute.xlu0 0
        %230 = vperm.xlu0 %229, %v227
        %v231 = vpop.permute.xlu0 %230
        %v235 = vcombine.high %v225, %v225
        %v237 = vunpack.c.l.s4 1983009808
        %v238 = vunpack.c.0.s8 %v237
        %v239 = vlaneseq
        %v240 = vshrl.u32 %v239, 7
        %v241 = vsub.s32 %v238, %v240
        %v242 = vrot.slane %v225, %v241
        %v244 = vunpack.c.l.s4 1983009808
        %v245 = vunpack.c.0.s8 %v244
        %v246 = vlaneseq
        %v247 = vshrl.u32 %v246, 7
        %v248 = vsub.s32 %v245, %v247
        %v249 = vrot.slane %v235, %v248
        %v250 = vcombine.high %v242, %v242
        %v251 = vcombine.high %v249, %v249
        %v252 = vcombine.high %v226, %v226
        %v254 = vunpack.c.l.s4 1983009808
        %v255 = vunpack.c.0.s8 %v254
        %v256 = vlaneseq
        %v257 = vshrl.u32 %v256, 7
        %v258 = vsub.s32 %v255, %v257
        %v259 = vrot.slane %v226, %v258
        %v261 = vunpack.c.l.s4 1983009808
        %v262 = vunpack.c.0.s8 %v261
        %v263 = vlaneseq
        %v264 = vshrl.u32 %v263, 7
        %v265 = vsub.s32 %v262, %v264
        %v266 = vrot.slane %v252, %v265
        %v267 = vcombine.high %v259, %v259
        %v268 = vcombine.high %v266, %v266
        %v277 = vmul.f32 %v231, %v242
        %v278 = vmul.f32 %v231, %v250
        %v279 = vmul.f32 %v231, %v249
        %v280 = vmul.f32 %v231, %v251
        %v281 = vmul.f32 %v231, %v259
        %v282 = vmul.f32 %v231, %v267
        %v283 = vmul.f32 %v231, %v266
        %v284 = vmul.f32 %v231, %v268
        %286 = vset.pattern.permute.xlu0 0
        %287 = vperm.xlu0 %286, %v222
        %v288 = vpop.permute.xlu0 %287
        %v292 = vcombine.high %v220, %v220
        %v294 = vunpack.c.l.s4 1983009808
        %v295 = vunpack.c.0.s8 %v294
        %v296 = vlaneseq
        %v297 = vshrl.u32 %v296, 7
        %v298 = vsub.s32 %v295, %v297
        %v299 = vrot.slane %v220, %v298
        %v301 = vunpack.c.l.s4 1983009808
        %v302 = vunpack.c.0.s8 %v301
        %v303 = vlaneseq
        %v304 = vshrl.u32 %v303, 7
        %v305 = vsub.s32 %v302, %v304
        %v306 = vrot.slane %v292, %v305
        %v307 = vcombine.high %v299, %v299
        %v308 = vcombine.high %v306, %v306
        %v309 = vcombine.high %v221, %v221
        %v311 = vunpack.c.l.s4 1983009808
        %v312 = vunpack.c.0.s8 %v311
        %v313 = vlaneseq
        %v314 = vshrl.u32 %v313, 7
        %v315 = vsub.s32 %v312, %v314
        %v316 = vrot.slane %v221, %v315
        %v318 = vunpack.c.l.s4 1983009808
        %v319 = vunpack.c.0.s8 %v318
        %v320 = vlaneseq
        %v321 = vshrl.u32 %v320, 7
        %v322 = vsub.s32 %v319, %v321
        %v323 = vrot.slane %v309, %v322
        %v324 = vcombine.high %v316, %v316
        %v325 = vcombine.high %v323, %v323
        %v334 = vmul.f32 %v288, %v299
        %v335 = vmul.f32 %v288, %v307
        %v336 = vmul.f32 %v288, %v306
        %v337 = vmul.f32 %v288, %v308
        %v338 = vmul.f32 %v288, %v316
        %v339 = vmul.f32 %v288, %v324
        %v340 = vmul.f32 %v288, %v323
        %v341 = vmul.f32 %v288, %v325
        %v342 = vadd.f32 %v277, %v334
        %v343 = vadd.f32 %v278, %v335
        %v344 = vadd.f32 %v279, %v336
        %v345 = vadd.f32 %v280, %v337
        %v346 = vadd.f32 %v281, %v338
        %v347 = vadd.f32 %v282, %v339
        %v348 = vadd.f32 %v283, %v340
        %v349 = vadd.f32 %v284, %v341
        %v350 = vpack.c.bf16 %v342, %v342
        %v351 = vpack.c.bf16 %v343, %v343
        %v352 = vpack.c.bf16 %v344, %v344
        %v353 = vpack.c.bf16 %v345, %v345
        %v354 = vpack.c.bf16 %v346, %v346
        %v355 = vpack.c.bf16 %v347, %v347
        %v356 = vpack.c.bf16 %v348, %v348
        %v357 = vpack.c.bf16 %v349, %v349
        %v358 = vld [vmem:[%s188] sm:$0xff]
        %v359 = vld [vmem:[%s188 + $0x8] sm:$0xff]
        %v360 = vld [vmem:[%s188 + $0x10] sm:$0xff]
        %v361 = vld [vmem:[%s188 + $0x18] sm:$0xff]
        %v362 = vld [vmem:[%s188 + $0x20] sm:$0xff]
        %v363 = vld [vmem:[%s188 + $0x28] sm:$0xff]
        %v364 = vld [vmem:[%s188 + $0x30] sm:$0xff]
        %v365 = vld [vmem:[%s188 + $0x38] sm:$0xff]
        %v366 = vld [vmem:[%s188 + $0x40] sm:$0xff]
        %v367 = vld [vmem:[%s188 + $0x48] sm:$0xff]
        %v368 = vld [vmem:[%s188 + $0x50] sm:$0xff]
        %v369 = vld [vmem:[%s188 + $0x58] sm:$0xff]
        %v370 = vld [vmem:[%s188 + $0x60] sm:$0xff]
        %v371 = vld [vmem:[%s188 + $0x68] sm:$0xff]
        %v372 = vld [vmem:[%s188 + $0x70] sm:$0xff]
        %v373 = vld [vmem:[%s188 + $0x78] sm:$0xff]
        %v374 = vld [vmem:[%s188 + $0x80] sm:$0xff]
        %v375 = vld [vmem:[%s188 + $0x88] sm:$0xff]
        %v376 = vld [vmem:[%s188 + $0x90] sm:$0xff]
        %v377 = vld [vmem:[%s188 + $0x98] sm:$0xff]
        %v378 = vld [vmem:[%s188 + $0xa0] sm:$0xff]
        %v379 = vld [vmem:[%s188 + $0xa8] sm:$0xff]
        %v380 = vld [vmem:[%s188 + $0xb0] sm:$0xff]
        %v381 = vld [vmem:[%s188 + $0xb8] sm:$0xff]
        %v382 = vld [vmem:[%s188 + $0xc0] sm:$0xff]
        %v383 = vld [vmem:[%s188 + $0xc8] sm:$0xff]
        %v384 = vld [vmem:[%s188 + $0xd0] sm:$0xff]
        %v385 = vld [vmem:[%s188 + $0xd8] sm:$0xff]
        %v386 = vld [vmem:[%s188 + $0xe0] sm:$0xff]
        %v387 = vld [vmem:[%s188 + $0xe8] sm:$0xff]
        %v388 = vld [vmem:[%s188 + $0xf0] sm:$0xff]
        %v389 = vld [vmem:[%s188 + $0xf8] sm:$0xff]
        %v390 = vld [vmem:[%s188 + $0x100] sm:$0xff]
        %v391 = vld [vmem:[%s188 + $0x108] sm:$0xff]
        %v392 = vld [vmem:[%s188 + $0x110] sm:$0xff]
        %v393 = vld [vmem:[%s188 + $0x118] sm:$0xff]
        %v394 = vld [vmem:[%s188 + $0x120] sm:$0xff]
        %v395 = vld [vmem:[%s188 + $0x128] sm:$0xff]
        %v396 = vld [vmem:[%s188 + $0x130] sm:$0xff]
        %v397 = vld [vmem:[%s188 + $0x138] sm:$0xff]
        %v398 = vld [vmem:[%s188 + $0x140] sm:$0xff]
        %v399 = vld [vmem:[%s188 + $0x148] sm:$0xff]
        %v400 = vld [vmem:[%s188 + $0x150] sm:$0xff]
        %v401 = vld [vmem:[%s188 + $0x158] sm:$0xff]
        %v402 = vld [vmem:[%s188 + $0x160] sm:$0xff]
        %v403 = vld [vmem:[%s188 + $0x168] sm:$0xff]
        %v404 = vld [vmem:[%s188 + $0x170] sm:$0xff]
        %v405 = vld [vmem:[%s188 + $0x178] sm:$0xff]
        %v406 = vld [vmem:[%s188 + $0x180] sm:$0xff]
        %v407 = vld [vmem:[%s188 + $0x188] sm:$0xff]
        %v408 = vld [vmem:[%s188 + $0x190] sm:$0xff]
        %v409 = vld [vmem:[%s188 + $0x198] sm:$0xff]
        %v410 = vld [vmem:[%s188 + $0x1a0] sm:$0xff]
        %v411 = vld [vmem:[%s188 + $0x1a8] sm:$0xff]
        %v412 = vld [vmem:[%s188 + $0x1b0] sm:$0xff]
        %v413 = vld [vmem:[%s188 + $0x1b8] sm:$0xff]
        %v414 = vld [vmem:[%s188 + $0x1c0] sm:$0xff]
        %v415 = vld [vmem:[%s188 + $0x1c8] sm:$0xff]
        %v416 = vld [vmem:[%s188 + $0x1d0] sm:$0xff]
        %v417 = vld [vmem:[%s188 + $0x1d8] sm:$0xff]
        %v418 = vld [vmem:[%s188 + $0x1e0] sm:$0xff]
        %v419 = vld [vmem:[%s188 + $0x1e8] sm:$0xff]
        %v420 = vld [vmem:[%s188 + $0x1f0] sm:$0xff]
        %v421 = vld [vmem:[%s188 + $0x1f8] sm:$0xff]
        %v422 = vld [vmem:[%s188 + $0x200] sm:$0xff]
        %v423 = vld [vmem:[%s188 + $0x208] sm:$0xff]
        %v424 = vld [vmem:[%s188 + $0x210] sm:$0xff]
        %v425 = vld [vmem:[%s188 + $0x218] sm:$0xff]
        %v426 = vld [vmem:[%s188 + $0x220] sm:$0xff]
        %v427 = vld [vmem:[%s188 + $0x228] sm:$0xff]
        %v428 = vld [vmem:[%s188 + $0x230] sm:$0xff]
        %v429 = vld [vmem:[%s188 + $0x238] sm:$0xff]
        %v430 = vld [vmem:[%s188 + $0x240] sm:$0xff]
        %v431 = vld [vmem:[%s188 + $0x248] sm:$0xff]
        %v432 = vld [vmem:[%s188 + $0x250] sm:$0xff]
        %v433 = vld [vmem:[%s188 + $0x258] sm:$0xff]
        %v434 = vld [vmem:[%s188 + $0x260] sm:$0xff]
        %v435 = vld [vmem:[%s188 + $0x268] sm:$0xff]
        %v436 = vld [vmem:[%s188 + $0x270] sm:$0xff]
        %v437 = vld [vmem:[%s188 + $0x278] sm:$0xff]
        %v438 = vld [vmem:[%s188 + $0x280] sm:$0xff]
        %v439 = vld [vmem:[%s188 + $0x288] sm:$0xff]
        %v440 = vld [vmem:[%s188 + $0x290] sm:$0xff]
        %v441 = vld [vmem:[%s188 + $0x298] sm:$0xff]
        %v442 = vld [vmem:[%s188 + $0x2a0] sm:$0xff]
        %v443 = vld [vmem:[%s188 + $0x2a8] sm:$0xff]
        %v444 = vld [vmem:[%s188 + $0x2b0] sm:$0xff]
        %v445 = vld [vmem:[%s188 + $0x2b8] sm:$0xff]
        %v446 = vld [vmem:[%s188 + $0x2c0] sm:$0xff]
        %v447 = vld [vmem:[%s188 + $0x2c8] sm:$0xff]
        %v448 = vld [vmem:[%s188 + $0x2d0] sm:$0xff]
        %v449 = vld [vmem:[%s188 + $0x2d8] sm:$0xff]
        %v450 = vld [vmem:[%s188 + $0x2e0] sm:$0xff]
        %v451 = vld [vmem:[%s188 + $0x2e8] sm:$0xff]
        %v452 = vld [vmem:[%s188 + $0x2f0] sm:$0xff]
        %v453 = vld [vmem:[%s188 + $0x2f8] sm:$0xff]
        %v454 = vld [vmem:[%s188 + $0x300] sm:$0xff]
        %v455 = vld [vmem:[%s188 + $0x308] sm:$0xff]
        %v456 = vld [vmem:[%s188 + $0x310] sm:$0xff]
        %v457 = vld [vmem:[%s188 + $0x318] sm:$0xff]
        %v458 = vld [vmem:[%s188 + $0x320] sm:$0xff]
        %v459 = vld [vmem:[%s188 + $0x328] sm:$0xff]
        %v460 = vld [vmem:[%s188 + $0x330] sm:$0xff]
        %v461 = vld [vmem:[%s188 + $0x338] sm:$0xff]
        %v462 = vld [vmem:[%s188 + $0x340] sm:$0xff]
        %v463 = vld [vmem:[%s188 + $0x348] sm:$0xff]
        %v464 = vld [vmem:[%s188 + $0x350] sm:$0xff]
        %v465 = vld [vmem:[%s188 + $0x358] sm:$0xff]
        %v466 = vld [vmem:[%s188 + $0x360] sm:$0xff]
        %v467 = vld [vmem:[%s188 + $0x368] sm:$0xff]
        %v468 = vld [vmem:[%s188 + $0x370] sm:$0xff]
        %v469 = vld [vmem:[%s188 + $0x378] sm:$0xff]
        %v470 = vld [vmem:[%s188 + $0x380] sm:$0xff]
        %v471 = vld [vmem:[%s188 + $0x388] sm:$0xff]
        %v472 = vld [vmem:[%s188 + $0x390] sm:$0xff]
        %v473 = vld [vmem:[%s188 + $0x398] sm:$0xff]
        %v474 = vld [vmem:[%s188 + $0x3a0] sm:$0xff]
        %v475 = vld [vmem:[%s188 + $0x3a8] sm:$0xff]
        %v476 = vld [vmem:[%s188 + $0x3b0] sm:$0xff]
        %v477 = vld [vmem:[%s188 + $0x3b8] sm:$0xff]
        %v478 = vld [vmem:[%s188 + $0x3c0] sm:$0xff]
        %v479 = vld [vmem:[%s188 + $0x3c8] sm:$0xff]
        %v480 = vld [vmem:[%s188 + $0x3d0] sm:$0xff]
        %v481 = vld [vmem:[%s188 + $0x3d8] sm:$0xff]
        %v482 = vld [vmem:[%s188 + $0x3e0] sm:$0xff]
        %v483 = vld [vmem:[%s188 + $0x3e8] sm:$0xff]
        %v484 = vld [vmem:[%s188 + $0x3f0] sm:$0xff]
        %v485 = vld [vmem:[%s188 + $0x3f8] sm:$0xff]
        %v486 = vld [vmem:[%s188 + $0x400] sm:$0xff]
        %v487 = vld [vmem:[%s188 + $0x408] sm:$0xff]
        %v488 = vld [vmem:[%s188 + $0x410] sm:$0xff]
        %v489 = vld [vmem:[%s188 + $0x418] sm:$0xff]
        %v490 = vld [vmem:[%s188 + $0x420] sm:$0xff]
        %v491 = vld [vmem:[%s188 + $0x428] sm:$0xff]
        %v492 = vld [vmem:[%s188 + $0x430] sm:$0xff]
        %v493 = vld [vmem:[%s188 + $0x438] sm:$0xff]
        %v494 = vld [vmem:[%s188 + $0x440] sm:$0xff]
        %v495 = vld [vmem:[%s188 + $0x448] sm:$0xff]
        %v496 = vld [vmem:[%s188 + $0x450] sm:$0xff]
        %v497 = vld [vmem:[%s188 + $0x458] sm:$0xff]
        %v498 = vld [vmem:[%s188 + $0x460] sm:$0xff]
        %v499 = vld [vmem:[%s188 + $0x468] sm:$0xff]
        %v500 = vld [vmem:[%s188 + $0x470] sm:$0xff]
        %v501 = vld [vmem:[%s188 + $0x478] sm:$0xff]
        %v502 = vld [vmem:[%s188 + $0x480] sm:$0xff]
        %v503 = vld [vmem:[%s188 + $0x488] sm:$0xff]
        %v504 = vld [vmem:[%s188 + $0x490] sm:$0xff]
        %v505 = vld [vmem:[%s188 + $0x498] sm:$0xff]
        %v506 = vld [vmem:[%s188 + $0x4a0] sm:$0xff]
        %v507 = vld [vmem:[%s188 + $0x4a8] sm:$0xff]
        %v508 = vld [vmem:[%s188 + $0x4b0] sm:$0xff]
        %v509 = vld [vmem:[%s188 + $0x4b8] sm:$0xff]
        %v510 = vld [vmem:[%s188 + $0x4c0] sm:$0xff]
        %v511 = vld [vmem:[%s188 + $0x4c8] sm:$0xff]
        %v512 = vld [vmem:[%s188 + $0x4d0] sm:$0xff]
        %v513 = vld [vmem:[%s188 + $0x4d8] sm:$0xff]
        %v514 = vld [vmem:[%s188 + $0x4e0] sm:$0xff]
        %v515 = vld [vmem:[%s188 + $0x4e8] sm:$0xff]
        %v516 = vld [vmem:[%s188 + $0x4f0] sm:$0xff]
        %v517 = vld [vmem:[%s188 + $0x4f8] sm:$0xff]
        %v518 = vld [vmem:[%s188 + $0x500] sm:$0xff]
        %v519 = vld [vmem:[%s188 + $0x508] sm:$0xff]
        %v520 = vld [vmem:[%s188 + $0x510] sm:$0xff]
        %v521 = vld [vmem:[%s188 + $0x518] sm:$0xff]
        %v522 = vld [vmem:[%s188 + $0x520] sm:$0xff]
        %v523 = vld [vmem:[%s188 + $0x528] sm:$0xff]
        %v524 = vld [vmem:[%s188 + $0x530] sm:$0xff]
        %v525 = vld [vmem:[%s188 + $0x538] sm:$0xff]
        %v526 = vld [vmem:[%s188 + $0x540] sm:$0xff]
        %v527 = vld [vmem:[%s188 + $0x548] sm:$0xff]
        %v528 = vld [vmem:[%s188 + $0x550] sm:$0xff]
        %v529 = vld [vmem:[%s188 + $0x558] sm:$0xff]
        %v530 = vld [vmem:[%s188 + $0x560] sm:$0xff]
        %v531 = vld [vmem:[%s188 + $0x568] sm:$0xff]
        %v532 = vld [vmem:[%s188 + $0x570] sm:$0xff]
        %v533 = vld [vmem:[%s188 + $0x578] sm:$0xff]
        %v534 = vld [vmem:[%s188 + $0x580] sm:$0xff]
        %v535 = vld [vmem:[%s188 + $0x588] sm:$0xff]
        %v536 = vld [vmem:[%s188 + $0x590] sm:$0xff]
        %v537 = vld [vmem:[%s188 + $0x598] sm:$0xff]
        %v538 = vld [vmem:[%s188 + $0x5a0] sm:$0xff]
        %v539 = vld [vmem:[%s188 + $0x5a8] sm:$0xff]
        %v540 = vld [vmem:[%s188 + $0x5b0] sm:$0xff]
        %v541 = vld [vmem:[%s188 + $0x5b8] sm:$0xff]
        %v542 = vld [vmem:[%s188 + $0x5c0] sm:$0xff]
        %v543 = vld [vmem:[%s188 + $0x5c8] sm:$0xff]
        %v544 = vld [vmem:[%s188 + $0x5d0] sm:$0xff]
        %v545 = vld [vmem:[%s188 + $0x5d8] sm:$0xff]
        %v546 = vld [vmem:[%s188 + $0x5e0] sm:$0xff]
        %v547 = vld [vmem:[%s188 + $0x5e8] sm:$0xff]
        %v548 = vld [vmem:[%s188 + $0x5f0] sm:$0xff]
        %v549 = vld [vmem:[%s188 + $0x5f8] sm:$0xff]
        %v550 = vld [vmem:[%s188 + $0x600] sm:$0xff]
        %v551 = vld [vmem:[%s188 + $0x608] sm:$0xff]
        %v552 = vld [vmem:[%s188 + $0x610] sm:$0xff]
        %v553 = vld [vmem:[%s188 + $0x618] sm:$0xff]
        %v554 = vld [vmem:[%s188 + $0x620] sm:$0xff]
        %v555 = vld [vmem:[%s188 + $0x628] sm:$0xff]
        %v556 = vld [vmem:[%s188 + $0x630] sm:$0xff]
        %v557 = vld [vmem:[%s188 + $0x638] sm:$0xff]
        %v558 = vld [vmem:[%s188 + $0x640] sm:$0xff]
        %v559 = vld [vmem:[%s188 + $0x648] sm:$0xff]
        %v560 = vld [vmem:[%s188 + $0x650] sm:$0xff]
        %v561 = vld [vmem:[%s188 + $0x658] sm:$0xff]
        %v562 = vld [vmem:[%s188 + $0x660] sm:$0xff]
        %v563 = vld [vmem:[%s188 + $0x668] sm:$0xff]
        %v564 = vld [vmem:[%s188 + $0x670] sm:$0xff]
        %v565 = vld [vmem:[%s188 + $0x678] sm:$0xff]
        %v566 = vld [vmem:[%s188 + $0x680] sm:$0xff]
        %v567 = vld [vmem:[%s188 + $0x688] sm:$0xff]
        %v568 = vld [vmem:[%s188 + $0x690] sm:$0xff]
        %v569 = vld [vmem:[%s188 + $0x698] sm:$0xff]
        %v570 = vld [vmem:[%s188 + $0x6a0] sm:$0xff]
        %v571 = vld [vmem:[%s188 + $0x6a8] sm:$0xff]
        %v572 = vld [vmem:[%s188 + $0x6b0] sm:$0xff]
        %v573 = vld [vmem:[%s188 + $0x6b8] sm:$0xff]
        %v574 = vld [vmem:[%s188 + $0x6c0] sm:$0xff]
        %v575 = vld [vmem:[%s188 + $0x6c8] sm:$0xff]
        %v576 = vld [vmem:[%s188 + $0x6d0] sm:$0xff]
        %v577 = vld [vmem:[%s188 + $0x6d8] sm:$0xff]
        %v578 = vld [vmem:[%s188 + $0x6e0] sm:$0xff]
        %v579 = vld [vmem:[%s188 + $0x6e8] sm:$0xff]
        %v580 = vld [vmem:[%s188 + $0x6f0] sm:$0xff]
        %v581 = vld [vmem:[%s188 + $0x6f8] sm:$0xff]
        %v582 = vld [vmem:[%s188 + $0x700] sm:$0xff]
        %v583 = vld [vmem:[%s188 + $0x708] sm:$0xff]
        %v584 = vld [vmem:[%s188 + $0x710] sm:$0xff]
        %v585 = vld [vmem:[%s188 + $0x718] sm:$0xff]
        %v586 = vld [vmem:[%s188 + $0x720] sm:$0xff]
        %v587 = vld [vmem:[%s188 + $0x728] sm:$0xff]
        %v588 = vld [vmem:[%s188 + $0x730] sm:$0xff]
        %v589 = vld [vmem:[%s188 + $0x738] sm:$0xff]
        %v590 = vld [vmem:[%s188 + $0x740] sm:$0xff]
        %v591 = vld [vmem:[%s188 + $0x748] sm:$0xff]
        %v592 = vld [vmem:[%s188 + $0x750] sm:$0xff]
        %v593 = vld [vmem:[%s188 + $0x758] sm:$0xff]
        %v594 = vld [vmem:[%s188 + $0x760] sm:$0xff]
        %v595 = vld [vmem:[%s188 + $0x768] sm:$0xff]
        %v596 = vld [vmem:[%s188 + $0x770] sm:$0xff]
        %v597 = vld [vmem:[%s188 + $0x778] sm:$0xff]
        %v598 = vld [vmem:[%s188 + $0x780] sm:$0xff]
        %v599 = vld [vmem:[%s188 + $0x788] sm:$0xff]
        %v600 = vld [vmem:[%s188 + $0x790] sm:$0xff]
        %v601 = vld [vmem:[%s188 + $0x798] sm:$0xff]
        %v602 = vld [vmem:[%s188 + $0x7a0] sm:$0xff]
        %v603 = vld [vmem:[%s188 + $0x7a8] sm:$0xff]
        %v604 = vld [vmem:[%s188 + $0x7b0] sm:$0xff]
        %v605 = vld [vmem:[%s188 + $0x7b8] sm:$0xff]
        %v606 = vld [vmem:[%s188 + $0x7c0] sm:$0xff]
        %v607 = vld [vmem:[%s188 + $0x7c8] sm:$0xff]
        %v608 = vld [vmem:[%s188 + $0x7d0] sm:$0xff]
        %v609 = vld [vmem:[%s188 + $0x7d8] sm:$0xff]
        %v610 = vld [vmem:[%s188 + $0x7e0] sm:$0xff]
        %v611 = vld [vmem:[%s188 + $0x7e8] sm:$0xff]
        %v612 = vld [vmem:[%s188 + $0x7f0] sm:$0xff]
        %v613 = vld [vmem:[%s188 + $0x7f8] sm:$0xff]
        %v870 = vunpack.c.l.b16 %v358
        %v871 = vunpack.c.h.b16 %v358
        %v872 = vunpack.c.l.b16 %v359
        %v873 = vunpack.c.h.b16 %v359
        %v874 = vunpack.c.l.b16 %v360
        %v875 = vunpack.c.h.b16 %v360
        %v876 = vunpack.c.l.b16 %v361
        %v877 = vunpack.c.h.b16 %v361
        %v878 = vunpack.c.l.b16 %v362
        %v879 = vunpack.c.h.b16 %v362
        %v880 = vunpack.c.l.b16 %v363
        %v881 = vunpack.c.h.b16 %v363
        %v882 = vunpack.c.l.b16 %v364
        %v883 = vunpack.c.h.b16 %v364
        %v884 = vunpack.c.l.b16 %v365
        %v885 = vunpack.c.h.b16 %v365
        %v886 = vunpack.c.l.b16 %v366
        %v887 = vunpack.c.h.b16 %v366
        %v888 = vunpack.c.l.b16 %v367
        %v889 = vunpack.c.h.b16 %v367
        %v890 = vunpack.c.l.b16 %v368
        %v891 = vunpack.c.h.b16 %v368
        %v892 = vunpack.c.l.b16 %v369
        %v893 = vunpack.c.h.b16 %v369
        %v894 = vunpack.c.l.b16 %v370
        %v895 = vunpack.c.h.b16 %v370
        %v896 = vunpack.c.l.b16 %v371
        %v897 = vunpack.c.h.b16 %v371
        %v898 = vunpack.c.l.b16 %v372
        %v899 = vunpack.c.h.b16 %v372
        %v900 = vunpack.c.l.b16 %v373
        %v901 = vunpack.c.h.b16 %v373
        %v902 = vunpack.c.l.b16 %v374
        %v903 = vunpack.c.h.b16 %v374
        %v904 = vunpack.c.l.b16 %v375
        %v905 = vunpack.c.h.b16 %v375
        %v906 = vunpack.c.l.b16 %v376
        %v907 = vunpack.c.h.b16 %v376
        %v908 = vunpack.c.l.b16 %v377
        %v909 = vunpack.c.h.b16 %v377
        %v910 = vunpack.c.l.b16 %v378
        %v911 = vunpack.c.h.b16 %v378
        %v912 = vunpack.c.l.b16 %v379
        %v913 = vunpack.c.h.b16 %v379
        %v914 = vunpack.c.l.b16 %v380
        %v915 = vunpack.c.h.b16 %v380
        %v916 = vunpack.c.l.b16 %v381
        %v917 = vunpack.c.h.b16 %v381
        %v918 = vunpack.c.l.b16 %v382
        %v919 = vunpack.c.h.b16 %v382
        %v920 = vunpack.c.l.b16 %v383
        %v921 = vunpack.c.h.b16 %v383
        %v922 = vunpack.c.l.b16 %v384
        %v923 = vunpack.c.h.b16 %v384
        %v924 = vunpack.c.l.b16 %v385
        %v925 = vunpack.c.h.b16 %v385
        %v926 = vunpack.c.l.b16 %v386
        %v927 = vunpack.c.h.b16 %v386
        %v928 = vunpack.c.l.b16 %v387
        %v929 = vunpack.c.h.b16 %v387
        %v930 = vunpack.c.l.b16 %v388
        %v931 = vunpack.c.h.b16 %v388
        %v932 = vunpack.c.l.b16 %v389
        %v933 = vunpack.c.h.b16 %v389
        %v934 = vunpack.c.l.b16 %v390
        %v935 = vunpack.c.h.b16 %v390
        %v936 = vunpack.c.l.b16 %v391
        %v937 = vunpack.c.h.b16 %v391
        %v938 = vunpack.c.l.b16 %v392
        %v939 = vunpack.c.h.b16 %v392
        %v940 = vunpack.c.l.b16 %v393
        %v941 = vunpack.c.h.b16 %v393
        %v942 = vunpack.c.l.b16 %v394
        %v943 = vunpack.c.h.b16 %v394
        %v944 = vunpack.c.l.b16 %v395
        %v945 = vunpack.c.h.b16 %v395
        %v946 = vunpack.c.l.b16 %v396
        %v947 = vunpack.c.h.b16 %v396
        %v948 = vunpack.c.l.b16 %v397
        %v949 = vunpack.c.h.b16 %v397
        %v950 = vunpack.c.l.b16 %v398
        %v951 = vunpack.c.h.b16 %v398
        %v952 = vunpack.c.l.b16 %v399
        %v953 = vunpack.c.h.b16 %v399
        %v954 = vunpack.c.l.b16 %v400
        %v955 = vunpack.c.h.b16 %v400
        %v956 = vunpack.c.l.b16 %v401
        %v957 = vunpack.c.h.b16 %v401
        %v958 = vunpack.c.l.b16 %v402
        %v959 = vunpack.c.h.b16 %v402
        %v960 = vunpack.c.l.b16 %v403
        %v961 = vunpack.c.h.b16 %v403
        %v962 = vunpack.c.l.b16 %v404
        %v963 = vunpack.c.h.b16 %v404
        %v964 = vunpack.c.l.b16 %v405
        %v965 = vunpack.c.h.b16 %v405
        %v966 = vunpack.c.l.b16 %v406
        %v967 = vunpack.c.h.b16 %v406
        %v968 = vunpack.c.l.b16 %v407
        %v969 = vunpack.c.h.b16 %v407
        %v970 = vunpack.c.l.b16 %v408
        %v971 = vunpack.c.h.b16 %v408
        %v972 = vunpack.c.l.b16 %v409
        %v973 = vunpack.c.h.b16 %v409
        %v974 = vunpack.c.l.b16 %v410
        %v975 = vunpack.c.h.b16 %v410
        %v976 = vunpack.c.l.b16 %v411
        %v977 = vunpack.c.h.b16 %v411
        %v978 = vunpack.c.l.b16 %v412
        %v979 = vunpack.c.h.b16 %v412
        %v980 = vunpack.c.l.b16 %v413
        %v981 = vunpack.c.h.b16 %v413
        %v982 = vunpack.c.l.b16 %v414
        %v983 = vunpack.c.h.b16 %v414
        %v984 = vunpack.c.l.b16 %v415
        %v985 = vunpack.c.h.b16 %v415
        %v986 = vunpack.c.l.b16 %v416
        %v987 = vunpack.c.h.b16 %v416
        %v988 = vunpack.c.l.b16 %v417
        %v989 = vunpack.c.h.b16 %v417
        %v990 = vunpack.c.l.b16 %v418
        %v991 = vunpack.c.h.b16 %v418
        %v992 = vunpack.c.l.b16 %v419
        %v993 = vunpack.c.h.b16 %v419
        %v994 = vunpack.c.l.b16 %v420
        %v995 = vunpack.c.h.b16 %v420
        %v996 = vunpack.c.l.b16 %v421
        %v997 = vunpack.c.h.b16 %v421
        %v998 = vunpack.c.l.b16 %v422
        %v999 = vunpack.c.h.b16 %v422
        %v1000 = vunpack.c.l.b16 %v423
        %v1001 = vunpack.c.h.b16 %v423
        %v1002 = vunpack.c.l.b16 %v424
        %v1003 = vunpack.c.h.b16 %v424
        %v1004 = vunpack.c.l.b16 %v425
        %v1005 = vunpack.c.h.b16 %v425
        %v1006 = vunpack.c.l.b16 %v426
        %v1007 = vunpack.c.h.b16 %v426
        %v1008 = vunpack.c.l.b16 %v427
        %v1009 = vunpack.c.h.b16 %v427
        %v1010 = vunpack.c.l.b16 %v428
        %v1011 = vunpack.c.h.b16 %v428
        %v1012 = vunpack.c.l.b16 %v429
        %v1013 = vunpack.c.h.b16 %v429
        %v1014 = vunpack.c.l.b16 %v430
        %v1015 = vunpack.c.h.b16 %v430
        %v1016 = vunpack.c.l.b16 %v431
        %v1017 = vunpack.c.h.b16 %v431
        %v1018 = vunpack.c.l.b16 %v432
        %v1019 = vunpack.c.h.b16 %v432
        %v1020 = vunpack.c.l.b16 %v433
        %v1021 = vunpack.c.h.b16 %v433
        %v1022 = vunpack.c.l.b16 %v434
        %v1023 = vunpack.c.h.b16 %v434
        %v1024 = vunpack.c.l.b16 %v435
        %v1025 = vunpack.c.h.b16 %v435
        %v1026 = vunpack.c.l.b16 %v436
        %v1027 = vunpack.c.h.b16 %v436
        %v1028 = vunpack.c.l.b16 %v437
        %v1029 = vunpack.c.h.b16 %v437
        %v1030 = vunpack.c.l.b16 %v438
        %v1031 = vunpack.c.h.b16 %v438
        %v1032 = vunpack.c.l.b16 %v439
        %v1033 = vunpack.c.h.b16 %v439
        %v1034 = vunpack.c.l.b16 %v440
        %v1035 = vunpack.c.h.b16 %v440
        %v1036 = vunpack.c.l.b16 %v441
        %v1037 = vunpack.c.h.b16 %v441
        %v1038 = vunpack.c.l.b16 %v442
        %v1039 = vunpack.c.h.b16 %v442
        %v1040 = vunpack.c.l.b16 %v443
        %v1041 = vunpack.c.h.b16 %v443
        %v1042 = vunpack.c.l.b16 %v444
        %v1043 = vunpack.c.h.b16 %v444
        %v1044 = vunpack.c.l.b16 %v445
        %v1045 = vunpack.c.h.b16 %v445
        %v1046 = vunpack.c.l.b16 %v446
        %v1047 = vunpack.c.h.b16 %v446
        %v1048 = vunpack.c.l.b16 %v447
        %v1049 = vunpack.c.h.b16 %v447
        %v1050 = vunpack.c.l.b16 %v448
        %v1051 = vunpack.c.h.b16 %v448
        %v1052 = vunpack.c.l.b16 %v449
        %v1053 = vunpack.c.h.b16 %v449
        %v1054 = vunpack.c.l.b16 %v450
        %v1055 = vunpack.c.h.b16 %v450
        %v1056 = vunpack.c.l.b16 %v451
        %v1057 = vunpack.c.h.b16 %v451
        %v1058 = vunpack.c.l.b16 %v452
        %v1059 = vunpack.c.h.b16 %v452
        %v1060 = vunpack.c.l.b16 %v453
        %v1061 = vunpack.c.h.b16 %v453
        %v1062 = vunpack.c.l.b16 %v454
        %v1063 = vunpack.c.h.b16 %v454
        %v1064 = vunpack.c.l.b16 %v455
        %v1065 = vunpack.c.h.b16 %v455
        %v1066 = vunpack.c.l.b16 %v456
        %v1067 = vunpack.c.h.b16 %v456
        %v1068 = vunpack.c.l.b16 %v457
        %v1069 = vunpack.c.h.b16 %v457
        %v1070 = vunpack.c.l.b16 %v458
        %v1071 = vunpack.c.h.b16 %v458
        %v1072 = vunpack.c.l.b16 %v459
        %v1073 = vunpack.c.h.b16 %v459
        %v1074 = vunpack.c.l.b16 %v460
        %v1075 = vunpack.c.h.b16 %v460
        %v1076 = vunpack.c.l.b16 %v461
        %v1077 = vunpack.c.h.b16 %v461
        %v1078 = vunpack.c.l.b16 %v462
        %v1079 = vunpack.c.h.b16 %v462
        %v1080 = vunpack.c.l.b16 %v463
        %v1081 = vunpack.c.h.b16 %v463
        %v1082 = vunpack.c.l.b16 %v464
        %v1083 = vunpack.c.h.b16 %v464
        %v1084 = vunpack.c.l.b16 %v465
        %v1085 = vunpack.c.h.b16 %v465
        %v1086 = vunpack.c.l.b16 %v466
        %v1087 = vunpack.c.h.b16 %v466
        %v1088 = vunpack.c.l.b16 %v467
        %v1089 = vunpack.c.h.b16 %v467
        %v1090 = vunpack.c.l.b16 %v468
        %v1091 = vunpack.c.h.b16 %v468
        %v1092 = vunpack.c.l.b16 %v469
        %v1093 = vunpack.c.h.b16 %v469
        %v1094 = vunpack.c.l.b16 %v470
        %v1095 = vunpack.c.h.b16 %v470
        %v1096 = vunpack.c.l.b16 %v471
        %v1097 = vunpack.c.h.b16 %v471
        %v1098 = vunpack.c.l.b16 %v472
        %v1099 = vunpack.c.h.b16 %v472
        %v1100 = vunpack.c.l.b16 %v473
        %v1101 = vunpack.c.h.b16 %v473
        %v1102 = vunpack.c.l.b16 %v474
        %v1103 = vunpack.c.h.b16 %v474
        %v1104 = vunpack.c.l.b16 %v475
        %v1105 = vunpack.c.h.b16 %v475
        %v1106 = vunpack.c.l.b16 %v476
        %v1107 = vunpack.c.h.b16 %v476
        %v1108 = vunpack.c.l.b16 %v477
        %v1109 = vunpack.c.h.b16 %v477
        %v1110 = vunpack.c.l.b16 %v478
        %v1111 = vunpack.c.h.b16 %v478
        %v1112 = vunpack.c.l.b16 %v479
        %v1113 = vunpack.c.h.b16 %v479
        %v1114 = vunpack.c.l.b16 %v480
        %v1115 = vunpack.c.h.b16 %v480
        %v1116 = vunpack.c.l.b16 %v481
        %v1117 = vunpack.c.h.b16 %v481
        %v1118 = vunpack.c.l.b16 %v482
        %v1119 = vunpack.c.h.b16 %v482
        %v1120 = vunpack.c.l.b16 %v483
        %v1121 = vunpack.c.h.b16 %v483
        %v1122 = vunpack.c.l.b16 %v484
        %v1123 = vunpack.c.h.b16 %v484
        %v1124 = vunpack.c.l.b16 %v485
        %v1125 = vunpack.c.h.b16 %v485
        %v1126 = vunpack.c.l.b16 %v486
        %v1127 = vunpack.c.h.b16 %v486
        %v1128 = vunpack.c.l.b16 %v487
        %v1129 = vunpack.c.h.b16 %v487
        %v1130 = vunpack.c.l.b16 %v488
        %v1131 = vunpack.c.h.b16 %v488
        %v1132 = vunpack.c.l.b16 %v489
        %v1133 = vunpack.c.h.b16 %v489
        %v1134 = vunpack.c.l.b16 %v490
        %v1135 = vunpack.c.h.b16 %v490
        %v1136 = vunpack.c.l.b16 %v491
        %v1137 = vunpack.c.h.b16 %v491
        %v1138 = vunpack.c.l.b16 %v492
        %v1139 = vunpack.c.h.b16 %v492
        %v1140 = vunpack.c.l.b16 %v493
        %v1141 = vunpack.c.h.b16 %v493
        %v1142 = vunpack.c.l.b16 %v494
        %v1143 = vunpack.c.h.b16 %v494
        %v1144 = vunpack.c.l.b16 %v495
        %v1145 = vunpack.c.h.b16 %v495
        %v1146 = vunpack.c.l.b16 %v496
        %v1147 = vunpack.c.h.b16 %v496
        %v1148 = vunpack.c.l.b16 %v497
        %v1149 = vunpack.c.h.b16 %v497
        %v1150 = vunpack.c.l.b16 %v498
        %v1151 = vunpack.c.h.b16 %v498
        %v1152 = vunpack.c.l.b16 %v499
        %v1153 = vunpack.c.h.b16 %v499
        %v1154 = vunpack.c.l.b16 %v500
        %v1155 = vunpack.c.h.b16 %v500
        %v1156 = vunpack.c.l.b16 %v501
        %v1157 = vunpack.c.h.b16 %v501
        %v1158 = vunpack.c.l.b16 %v502
        %v1159 = vunpack.c.h.b16 %v502
        %v1160 = vunpack.c.l.b16 %v503
        %v1161 = vunpack.c.h.b16 %v503
        %v1162 = vunpack.c.l.b16 %v504
        %v1163 = vunpack.c.h.b16 %v504
        %v1164 = vunpack.c.l.b16 %v505
        %v1165 = vunpack.c.h.b16 %v505
        %v1166 = vunpack.c.l.b16 %v506
        %v1167 = vunpack.c.h.b16 %v506
        %v1168 = vunpack.c.l.b16 %v507
        %v1169 = vunpack.c.h.b16 %v507
        %v1170 = vunpack.c.l.b16 %v508
        %v1171 = vunpack.c.h.b16 %v508
        %v1172 = vunpack.c.l.b16 %v509
        %v1173 = vunpack.c.h.b16 %v509
        %v1174 = vunpack.c.l.b16 %v510
        %v1175 = vunpack.c.h.b16 %v510
        %v1176 = vunpack.c.l.b16 %v511
        %v1177 = vunpack.c.h.b16 %v511
        %v1178 = vunpack.c.l.b16 %v512
        %v1179 = vunpack.c.h.b16 %v512
        %v1180 = vunpack.c.l.b16 %v513
        %v1181 = vunpack.c.h.b16 %v513
        %v1182 = vunpack.c.l.b16 %v514
        %v1183 = vunpack.c.h.b16 %v514
        %v1184 = vunpack.c.l.b16 %v515
        %v1185 = vunpack.c.h.b16 %v515
        %v1186 = vunpack.c.l.b16 %v516
        %v1187 = vunpack.c.h.b16 %v516
        %v1188 = vunpack.c.l.b16 %v517
        %v1189 = vunpack.c.h.b16 %v517
        %v1190 = vunpack.c.l.b16 %v518
        %v1191 = vunpack.c.h.b16 %v518
        %v1192 = vunpack.c.l.b16 %v519
        %v1193 = vunpack.c.h.b16 %v519
        %v1194 = vunpack.c.l.b16 %v520
        %v1195 = vunpack.c.h.b16 %v520
        %v1196 = vunpack.c.l.b16 %v521
        %v1197 = vunpack.c.h.b16 %v521
        %v1198 = vunpack.c.l.b16 %v522
        %v1199 = vunpack.c.h.b16 %v522
        %v1200 = vunpack.c.l.b16 %v523
        %v1201 = vunpack.c.h.b16 %v523
        %v1202 = vunpack.c.l.b16 %v524
        %v1203 = vunpack.c.h.b16 %v524
        %v1204 = vunpack.c.l.b16 %v525
        %v1205 = vunpack.c.h.b16 %v525
        %v1206 = vunpack.c.l.b16 %v526
        %v1207 = vunpack.c.h.b16 %v526
        %v1208 = vunpack.c.l.b16 %v527
        %v1209 = vunpack.c.h.b16 %v527
        %v1210 = vunpack.c.l.b16 %v528
        %v1211 = vunpack.c.h.b16 %v528
        %v1212 = vunpack.c.l.b16 %v529
        %v1213 = vunpack.c.h.b16 %v529
        %v1214 = vunpack.c.l.b16 %v530
        %v1215 = vunpack.c.h.b16 %v530
        %v1216 = vunpack.c.l.b16 %v531
        %v1217 = vunpack.c.h.b16 %v531
        %v1218 = vunpack.c.l.b16 %v532
        %v1219 = vunpack.c.h.b16 %v532
        %v1220 = vunpack.c.l.b16 %v533
        %v1221 = vunpack.c.h.b16 %v533
        %v1222 = vunpack.c.l.b16 %v534
        %v1223 = vunpack.c.h.b16 %v534
        %v1224 = vunpack.c.l.b16 %v535
        %v1225 = vunpack.c.h.b16 %v535
        %v1226 = vunpack.c.l.b16 %v536
        %v1227 = vunpack.c.h.b16 %v536
        %v1228 = vunpack.c.l.b16 %v537
        %v1229 = vunpack.c.h.b16 %v537
        %v1230 = vunpack.c.l.b16 %v538
        %v1231 = vunpack.c.h.b16 %v538
        %v1232 = vunpack.c.l.b16 %v539
        %v1233 = vunpack.c.h.b16 %v539
        %v1234 = vunpack.c.l.b16 %v540
        %v1235 = vunpack.c.h.b16 %v540
        %v1236 = vunpack.c.l.b16 %v541
        %v1237 = vunpack.c.h.b16 %v541
        %v1238 = vunpack.c.l.b16 %v542
        %v1239 = vunpack.c.h.b16 %v542
        %v1240 = vunpack.c.l.b16 %v543
        %v1241 = vunpack.c.h.b16 %v543
        %v1242 = vunpack.c.l.b16 %v544
        %v1243 = vunpack.c.h.b16 %v544
        %v1244 = vunpack.c.l.b16 %v545
        %v1245 = vunpack.c.h.b16 %v545
        %v1246 = vunpack.c.l.b16 %v546
        %v1247 = vunpack.c.h.b16 %v546
        %v1248 = vunpack.c.l.b16 %v547
        %v1249 = vunpack.c.h.b16 %v547
        %v1250 = vunpack.c.l.b16 %v548
        %v1251 = vunpack.c.h.b16 %v548
        %v1252 = vunpack.c.l.b16 %v549
        %v1253 = vunpack.c.h.b16 %v549
        %v1254 = vunpack.c.l.b16 %v550
        %v1255 = vunpack.c.h.b16 %v550
        %v1256 = vunpack.c.l.b16 %v551
        %v1257 = vunpack.c.h.b16 %v551
        %v1258 = vunpack.c.l.b16 %v552
        %v1259 = vunpack.c.h.b16 %v552
        %v1260 = vunpack.c.l.b16 %v553
        %v1261 = vunpack.c.h.b16 %v553
        %v1262 = vunpack.c.l.b16 %v554
        %v1263 = vunpack.c.h.b16 %v554
        %v1264 = vunpack.c.l.b16 %v555
        %v1265 = vunpack.c.h.b16 %v555
        %v1266 = vunpack.c.l.b16 %v556
        %v1267 = vunpack.c.h.b16 %v556
        %v1268 = vunpack.c.l.b16 %v557
        %v1269 = vunpack.c.h.b16 %v557
        %v1270 = vunpack.c.l.b16 %v558
        %v1271 = vunpack.c.h.b16 %v558
        %v1272 = vunpack.c.l.b16 %v559
        %v1273 = vunpack.c.h.b16 %v559
        %v1274 = vunpack.c.l.b16 %v560
        %v1275 = vunpack.c.h.b16 %v560
        %v1276 = vunpack.c.l.b16 %v561
        %v1277 = vunpack.c.h.b16 %v561
        %v1278 = vunpack.c.l.b16 %v562
        %v1279 = vunpack.c.h.b16 %v562
        %v1280 = vunpack.c.l.b16 %v563
        %v1281 = vunpack.c.h.b16 %v563
        %v1282 = vunpack.c.l.b16 %v564
        %v1283 = vunpack.c.h.b16 %v564
        %v1284 = vunpack.c.l.b16 %v565
        %v1285 = vunpack.c.h.b16 %v565
        %v1286 = vunpack.c.l.b16 %v566
        %v1287 = vunpack.c.h.b16 %v566
        %v1288 = vunpack.c.l.b16 %v567
        %v1289 = vunpack.c.h.b16 %v567
        %v1290 = vunpack.c.l.b16 %v568
        %v1291 = vunpack.c.h.b16 %v568
        %v1292 = vunpack.c.l.b16 %v569
        %v1293 = vunpack.c.h.b16 %v569
        %v1294 = vunpack.c.l.b16 %v570
        %v1295 = vunpack.c.h.b16 %v570
        %v1296 = vunpack.c.l.b16 %v571
        %v1297 = vunpack.c.h.b16 %v571
        %v1298 = vunpack.c.l.b16 %v572
        %v1299 = vunpack.c.h.b16 %v572
        %v1300 = vunpack.c.l.b16 %v573
        %v1301 = vunpack.c.h.b16 %v573
        %v1302 = vunpack.c.l.b16 %v574
        %v1303 = vunpack.c.h.b16 %v574
        %v1304 = vunpack.c.l.b16 %v575
        %v1305 = vunpack.c.h.b16 %v575
        %v1306 = vunpack.c.l.b16 %v576
        %v1307 = vunpack.c.h.b16 %v576
        %v1308 = vunpack.c.l.b16 %v577
        %v1309 = vunpack.c.h.b16 %v577
        %v1310 = vunpack.c.l.b16 %v578
        %v1311 = vunpack.c.h.b16 %v578
        %v1312 = vunpack.c.l.b16 %v579
        %v1313 = vunpack.c.h.b16 %v579
        %v1314 = vunpack.c.l.b16 %v580
        %v1315 = vunpack.c.h.b16 %v580
        %v1316 = vunpack.c.l.b16 %v581
        %v1317 = vunpack.c.h.b16 %v581
        %v1318 = vunpack.c.l.b16 %v582
        %v1319 = vunpack.c.h.b16 %v582
        %v1320 = vunpack.c.l.b16 %v583
        %v1321 = vunpack.c.h.b16 %v583
        %v1322 = vunpack.c.l.b16 %v584
        %v1323 = vunpack.c.h.b16 %v584
        %v1324 = vunpack.c.l.b16 %v585
        %v1325 = vunpack.c.h.b16 %v585
        %v1326 = vunpack.c.l.b16 %v586
        %v1327 = vunpack.c.h.b16 %v586
        %v1328 = vunpack.c.l.b16 %v587
        %v1329 = vunpack.c.h.b16 %v587
        %v1330 = vunpack.c.l.b16 %v588
        %v1331 = vunpack.c.h.b16 %v588
        %v1332 = vunpack.c.l.b16 %v589
        %v1333 = vunpack.c.h.b16 %v589
        %v1334 = vunpack.c.l.b16 %v590
        %v1335 = vunpack.c.h.b16 %v590
        %v1336 = vunpack.c.l.b16 %v591
        %v1337 = vunpack.c.h.b16 %v591
        %v1338 = vunpack.c.l.b16 %v592
        %v1339 = vunpack.c.h.b16 %v592
        %v1340 = vunpack.c.l.b16 %v593
        %v1341 = vunpack.c.h.b16 %v593
        %v1342 = vunpack.c.l.b16 %v594
        %v1343 = vunpack.c.h.b16 %v594
        %v1344 = vunpack.c.l.b16 %v595
        %v1345 = vunpack.c.h.b16 %v595
        %v1346 = vunpack.c.l.b16 %v596
        %v1347 = vunpack.c.h.b16 %v596
        %v1348 = vunpack.c.l.b16 %v597
        %v1349 = vunpack.c.h.b16 %v597
        %v1350 = vunpack.c.l.b16 %v598
        %v1351 = vunpack.c.h.b16 %v598
        %v1352 = vunpack.c.l.b16 %v599
        %v1353 = vunpack.c.h.b16 %v599
        %v1354 = vunpack.c.l.b16 %v600
        %v1355 = vunpack.c.h.b16 %v600
        %v1356 = vunpack.c.l.b16 %v601
        %v1357 = vunpack.c.h.b16 %v601
        %v1358 = vunpack.c.l.b16 %v602
        %v1359 = vunpack.c.h.b16 %v602
        %v1360 = vunpack.c.l.b16 %v603
        %v1361 = vunpack.c.h.b16 %v603
        %v1362 = vunpack.c.l.b16 %v604
        %v1363 = vunpack.c.h.b16 %v604
        %v1364 = vunpack.c.l.b16 %v605
        %v1365 = vunpack.c.h.b16 %v605
        %v1366 = vunpack.c.l.b16 %v606
        %v1367 = vunpack.c.h.b16 %v606
        %v1368 = vunpack.c.l.b16 %v607
        %v1369 = vunpack.c.h.b16 %v607
        %v1370 = vunpack.c.l.b16 %v608
        %v1371 = vunpack.c.h.b16 %v608
        %v1372 = vunpack.c.l.b16 %v609
        %v1373 = vunpack.c.h.b16 %v609
        %v1374 = vunpack.c.l.b16 %v610
        %v1375 = vunpack.c.h.b16 %v610
        %v1376 = vunpack.c.l.b16 %v611
        %v1377 = vunpack.c.h.b16 %v611
        %v1378 = vunpack.c.l.b16 %v612
        %v1379 = vunpack.c.h.b16 %v612
        %v1380 = vunpack.c.l.b16 %v613
        %v1381 = vunpack.c.h.b16 %v613
        %v1382 = vpack.c.b16 %v874, %v870
        %v1383 = vpack.c.b16 %v875, %v871
        %v1384 = vpack.c.b16 %v876, %v872
        %v1385 = vpack.c.b16 %v877, %v873
        %v1386 = vpack.c.b16 %v882, %v878
        %v1387 = vpack.c.b16 %v883, %v879
        %v1388 = vpack.c.b16 %v884, %v880
        %v1389 = vpack.c.b16 %v885, %v881
        %v1390 = vpack.c.b16 %v890, %v886
        %v1391 = vpack.c.b16 %v891, %v887
        %v1392 = vpack.c.b16 %v892, %v888
        %v1393 = vpack.c.b16 %v893, %v889
        %v1394 = vpack.c.b16 %v898, %v894
        %v1395 = vpack.c.b16 %v899, %v895
        %v1396 = vpack.c.b16 %v900, %v896
        %v1397 = vpack.c.b16 %v901, %v897
        %v1398 = vpack.c.b16 %v906, %v902
        %v1399 = vpack.c.b16 %v907, %v903
        %v1400 = vpack.c.b16 %v908, %v904
        %v1401 = vpack.c.b16 %v909, %v905
        %v1402 = vpack.c.b16 %v914, %v910
        %v1403 = vpack.c.b16 %v915, %v911
        %v1404 = vpack.c.b16 %v916, %v912
        %v1405 = vpack.c.b16 %v917, %v913
        %v1406 = vpack.c.b16 %v922, %v918
        %v1407 = vpack.c.b16 %v923, %v919
        %v1408 = vpack.c.b16 %v924, %v920
        %v1409 = vpack.c.b16 %v925, %v921
        %v1410 = vpack.c.b16 %v930, %v926
        %v1411 = vpack.c.b16 %v931, %v927
        %v1412 = vpack.c.b16 %v932, %v928
        %v1413 = vpack.c.b16 %v933, %v929
        %v1414 = vpack.c.b16 %v938, %v934
        %v1415 = vpack.c.b16 %v939, %v935
        %v1416 = vpack.c.b16 %v940, %v936
        %v1417 = vpack.c.b16 %v941, %v937
        %v1418 = vpack.c.b16 %v946, %v942
        %v1419 = vpack.c.b16 %v947, %v943
        %v1420 = vpack.c.b16 %v948, %v944
        %v1421 = vpack.c.b16 %v949, %v945
        %v1422 = vpack.c.b16 %v954, %v950
        %v1423 = vpack.c.b16 %v955, %v951
        %v1424 = vpack.c.b16 %v956, %v952
        %v1425 = vpack.c.b16 %v957, %v953
        %v1426 = vpack.c.b16 %v962, %v958
        %v1427 = vpack.c.b16 %v963, %v959
        %v1428 = vpack.c.b16 %v964, %v960
        %v1429 = vpack.c.b16 %v965, %v961
        %v1430 = vpack.c.b16 %v970, %v966
        %v1431 = vpack.c.b16 %v971, %v967
        %v1432 = vpack.c.b16 %v972, %v968
        %v1433 = vpack.c.b16 %v973, %v969
        %v1434 = vpack.c.b16 %v978, %v974
        %v1435 = vpack.c.b16 %v979, %v975
        %v1436 = vpack.c.b16 %v980, %v976
        %v1437 = vpack.c.b16 %v981, %v977
        %v1438 = vpack.c.b16 %v986, %v982
        %v1439 = vpack.c.b16 %v987, %v983
        %v1440 = vpack.c.b16 %v988, %v984
        %v1441 = vpack.c.b16 %v989, %v985
        %v1442 = vpack.c.b16 %v994, %v990
        %v1443 = vpack.c.b16 %v995, %v991
        %v1444 = vpack.c.b16 %v996, %v992
        %v1445 = vpack.c.b16 %v997, %v993
        %v1446 = vpack.c.b16 %v1002, %v998
        %v1447 = vpack.c.b16 %v1003, %v999
        %v1448 = vpack.c.b16 %v1004, %v1000
        %v1449 = vpack.c.b16 %v1005, %v1001
        %v1450 = vpack.c.b16 %v1010, %v1006
        %v1451 = vpack.c.b16 %v1011, %v1007
        %v1452 = vpack.c.b16 %v1012, %v1008
        %v1453 = vpack.c.b16 %v1013, %v1009
        %v1454 = vpack.c.b16 %v1018, %v1014
        %v1455 = vpack.c.b16 %v1019, %v1015
        %v1456 = vpack.c.b16 %v1020, %v1016
        %v1457 = vpack.c.b16 %v1021, %v1017
        %v1458 = vpack.c.b16 %v1026, %v1022
        %v1459 = vpack.c.b16 %v1027, %v1023
        %v1460 = vpack.c.b16 %v1028, %v1024
        %v1461 = vpack.c.b16 %v1029, %v1025
        %v1462 = vpack.c.b16 %v1034, %v1030
        %v1463 = vpack.c.b16 %v1035, %v1031
        %v1464 = vpack.c.b16 %v1036, %v1032
        %v1465 = vpack.c.b16 %v1037, %v1033
        %v1466 = vpack.c.b16 %v1042, %v1038
        %v1467 = vpack.c.b16 %v1043, %v1039
        %v1468 = vpack.c.b16 %v1044, %v1040
        %v1469 = vpack.c.b16 %v1045, %v1041
        %v1470 = vpack.c.b16 %v1050, %v1046
        %v1471 = vpack.c.b16 %v1051, %v1047
        %v1472 = vpack.c.b16 %v1052, %v1048
        %v1473 = vpack.c.b16 %v1053, %v1049
        %v1474 = vpack.c.b16 %v1058, %v1054
        %v1475 = vpack.c.b16 %v1059, %v1055
        %v1476 = vpack.c.b16 %v1060, %v1056
        %v1477 = vpack.c.b16 %v1061, %v1057
        %v1478 = vpack.c.b16 %v1066, %v1062
        %v1479 = vpack.c.b16 %v1067, %v1063
        %v1480 = vpack.c.b16 %v1068, %v1064
        %v1481 = vpack.c.b16 %v1069, %v1065
        %v1482 = vpack.c.b16 %v1074, %v1070
        %v1483 = vpack.c.b16 %v1075, %v1071
        %v1484 = vpack.c.b16 %v1076, %v1072
        %v1485 = vpack.c.b16 %v1077, %v1073
        %v1486 = vpack.c.b16 %v1082, %v1078
        %v1487 = vpack.c.b16 %v1083, %v1079
        %v1488 = vpack.c.b16 %v1084, %v1080
        %v1489 = vpack.c.b16 %v1085, %v1081
        %v1490 = vpack.c.b16 %v1090, %v1086
        %v1491 = vpack.c.b16 %v1091, %v1087
        %v1492 = vpack.c.b16 %v1092, %v1088
        %v1493 = vpack.c.b16 %v1093, %v1089
        %v1494 = vpack.c.b16 %v1098, %v1094
        %v1495 = vpack.c.b16 %v1099, %v1095
        %v1496 = vpack.c.b16 %v1100, %v1096
        %v1497 = vpack.c.b16 %v1101, %v1097
        %v1498 = vpack.c.b16 %v1106, %v1102
        %v1499 = vpack.c.b16 %v1107, %v1103
        %v1500 = vpack.c.b16 %v1108, %v1104
        %v1501 = vpack.c.b16 %v1109, %v1105
        %v1502 = vpack.c.b16 %v1114, %v1110
        %v1503 = vpack.c.b16 %v1115, %v1111
        %v1504 = vpack.c.b16 %v1116, %v1112
        %v1505 = vpack.c.b16 %v1117, %v1113
        %v1506 = vpack.c.b16 %v1122, %v1118
        %v1507 = vpack.c.b16 %v1123, %v1119
        %v1508 = vpack.c.b16 %v1124, %v1120
        %v1509 = vpack.c.b16 %v1125, %v1121
        %v1510 = vpack.c.b16 %v1130, %v1126
        %v1511 = vpack.c.b16 %v1131, %v1127
        %v1512 = vpack.c.b16 %v1132, %v1128
        %v1513 = vpack.c.b16 %v1133, %v1129
        %v1514 = vpack.c.b16 %v1138, %v1134
        %v1515 = vpack.c.b16 %v1139, %v1135
        %v1516 = vpack.c.b16 %v1140, %v1136
        %v1517 = vpack.c.b16 %v1141, %v1137
        %v1518 = vpack.c.b16 %v1146, %v1142
        %v1519 = vpack.c.b16 %v1147, %v1143
        %v1520 = vpack.c.b16 %v1148, %v1144
        %v1521 = vpack.c.b16 %v1149, %v1145
        %v1522 = vpack.c.b16 %v1154, %v1150
        %v1523 = vpack.c.b16 %v1155, %v1151
        %v1524 = vpack.c.b16 %v1156, %v1152
        %v1525 = vpack.c.b16 %v1157, %v1153
        %v1526 = vpack.c.b16 %v1162, %v1158
        %v1527 = vpack.c.b16 %v1163, %v1159
        %v1528 = vpack.c.b16 %v1164, %v1160
        %v1529 = vpack.c.b16 %v1165, %v1161
        %v1530 = vpack.c.b16 %v1170, %v1166
        %v1531 = vpack.c.b16 %v1171, %v1167
        %v1532 = vpack.c.b16 %v1172, %v1168
        %v1533 = vpack.c.b16 %v1173, %v1169
        %v1534 = vpack.c.b16 %v1178, %v1174
        %v1535 = vpack.c.b16 %v1179, %v1175
        %v1536 = vpack.c.b16 %v1180, %v1176
        %v1537 = vpack.c.b16 %v1181, %v1177
        %v1538 = vpack.c.b16 %v1186, %v1182
        %v1539 = vpack.c.b16 %v1187, %v1183
        %v1540 = vpack.c.b16 %v1188, %v1184
        %v1541 = vpack.c.b16 %v1189, %v1185
        %v1542 = vpack.c.b16 %v1194, %v1190
        %v1543 = vpack.c.b16 %v1195, %v1191
        %v1544 = vpack.c.b16 %v1196, %v1192
        %v1545 = vpack.c.b16 %v1197, %v1193
        %v1546 = vpack.c.b16 %v1202, %v1198
        %v1547 = vpack.c.b16 %v1203, %v1199
        %v1548 = vpack.c.b16 %v1204, %v1200
        %v1549 = vpack.c.b16 %v1205, %v1201
        %v1550 = vpack.c.b16 %v1210, %v1206
        %v1551 = vpack.c.b16 %v1211, %v1207
        %v1552 = vpack.c.b16 %v1212, %v1208
        %v1553 = vpack.c.b16 %v1213, %v1209
        %v1554 = vpack.c.b16 %v1218, %v1214
        %v1555 = vpack.c.b16 %v1219, %v1215
        %v1556 = vpack.c.b16 %v1220, %v1216
        %v1557 = vpack.c.b16 %v1221, %v1217
        %v1558 = vpack.c.b16 %v1226, %v1222
        %v1559 = vpack.c.b16 %v1227, %v1223
        %v1560 = vpack.c.b16 %v1228, %v1224
        %v1561 = vpack.c.b16 %v1229, %v1225
        %v1562 = vpack.c.b16 %v1234, %v1230
        %v1563 = vpack.c.b16 %v1235, %v1231
        %v1564 = vpack.c.b16 %v1236, %v1232
        %v1565 = vpack.c.b16 %v1237, %v1233
        %v1566 = vpack.c.b16 %v1242, %v1238
        %v1567 = vpack.c.b16 %v1243, %v1239
        %v1568 = vpack.c.b16 %v1244, %v1240
        %v1569 = vpack.c.b16 %v1245, %v1241
        %v1570 = vpack.c.b16 %v1250, %v1246
        %v1571 = vpack.c.b16 %v1251, %v1247
        %v1572 = vpack.c.b16 %v1252, %v1248
        %v1573 = vpack.c.b16 %v1253, %v1249
        %v1574 = vpack.c.b16 %v1258, %v1254
        %v1575 = vpack.c.b16 %v1259, %v1255
        %v1576 = vpack.c.b16 %v1260, %v1256
        %v1577 = vpack.c.b16 %v1261, %v1257
        %v1578 = vpack.c.b16 %v1266, %v1262
        %v1579 = vpack.c.b16 %v1267, %v1263
        %v1580 = vpack.c.b16 %v1268, %v1264
        %v1581 = vpack.c.b16 %v1269, %v1265
        %v1582 = vpack.c.b16 %v1274, %v1270
        %v1583 = vpack.c.b16 %v1275, %v1271
        %v1584 = vpack.c.b16 %v1276, %v1272
        %v1585 = vpack.c.b16 %v1277, %v1273
        %v1586 = vpack.c.b16 %v1282, %v1278
        %v1587 = vpack.c.b16 %v1283, %v1279
        %v1588 = vpack.c.b16 %v1284, %v1280
        %v1589 = vpack.c.b16 %v1285, %v1281
        %v1590 = vpack.c.b16 %v1290, %v1286
        %v1591 = vpack.c.b16 %v1291, %v1287
        %v1592 = vpack.c.b16 %v1292, %v1288
        %v1593 = vpack.c.b16 %v1293, %v1289
        %v1594 = vpack.c.b16 %v1298, %v1294
        %v1595 = vpack.c.b16 %v1299, %v1295
        %v1596 = vpack.c.b16 %v1300, %v1296
        %v1597 = vpack.c.b16 %v1301, %v1297
        %v1598 = vpack.c.b16 %v1306, %v1302
        %v1599 = vpack.c.b16 %v1307, %v1303
        %v1600 = vpack.c.b16 %v1308, %v1304
        %v1601 = vpack.c.b16 %v1309, %v1305
        %v1602 = vpack.c.b16 %v1314, %v1310
        %v1603 = vpack.c.b16 %v1315, %v1311
        %v1604 = vpack.c.b16 %v1316, %v1312
        %v1605 = vpack.c.b16 %v1317, %v1313
        %v1606 = vpack.c.b16 %v1322, %v1318
        %v1607 = vpack.c.b16 %v1323, %v1319
        %v1608 = vpack.c.b16 %v1324, %v1320
        %v1609 = vpack.c.b16 %v1325, %v1321
        %v1610 = vpack.c.b16 %v1330, %v1326
        %v1611 = vpack.c.b16 %v1331, %v1327
        %v1612 = vpack.c.b16 %v1332, %v1328
        %v1613 = vpack.c.b16 %v1333, %v1329
        %v1614 = vpack.c.b16 %v1338, %v1334
        %v1615 = vpack.c.b16 %v1339, %v1335
        %v1616 = vpack.c.b16 %v1340, %v1336
        %v1617 = vpack.c.b16 %v1341, %v1337
        %v1618 = vpack.c.b16 %v1346, %v1342
        %v1619 = vpack.c.b16 %v1347, %v1343
        %v1620 = vpack.c.b16 %v1348, %v1344
        %v1621 = vpack.c.b16 %v1349, %v1345
        %v1622 = vpack.c.b16 %v1354, %v1350
        %v1623 = vpack.c.b16 %v1355, %v1351
        %v1624 = vpack.c.b16 %v1356, %v1352
        %v1625 = vpack.c.b16 %v1357, %v1353
        %v1626 = vpack.c.b16 %v1362, %v1358
        %v1627 = vpack.c.b16 %v1363, %v1359
        %v1628 = vpack.c.b16 %v1364, %v1360
        %v1629 = vpack.c.b16 %v1365, %v1361
        %v1630 = vpack.c.b16 %v1370, %v1366
        %v1631 = vpack.c.b16 %v1371, %v1367
        %v1632 = vpack.c.b16 %v1372, %v1368
        %v1633 = vpack.c.b16 %v1373, %v1369
        %v1634 = vpack.c.b16 %v1378, %v1374
        %v1635 = vpack.c.b16 %v1379, %v1375
        %v1636 = vpack.c.b16 %v1380, %v1376
        %v1637 = vpack.c.b16 %v1381, %v1377
        %1894 = vmatprep.subr.bf16.mxu0 %v1411
        %1895 = vmatpush1.bf16.msra.mxu0 %v1410
        %1896 = vmatprep.subr.bf16.mxu0 %v1407
        %1897 = vmatpush1.bf16.msra.mxu0 %v1406
        %1898 = vmatprep.subr.bf16.mxu0 %v1403
        %1899 = vmatpush1.bf16.msra.mxu0 %v1402
        %1900 = vmatprep.subr.bf16.mxu0 %v1399
        %1901 = vmatpush1.bf16.msra.mxu0 %v1398
        %1902 = vmatprep.subr.bf16.mxu0 %v1395
        %1903 = vmatpush1.bf16.msra.mxu0 %v1394
        %1904 = vmatprep.subr.bf16.mxu0 %v1391
        %1905 = vmatpush1.bf16.msra.mxu0 %v1390
        %1906 = vmatprep.subr.bf16.mxu0 %v1387
        %1907 = vmatpush1.bf16.msra.mxu0 %v1386
        %1908 = vmatprep.subr.bf16.mxu0 %v1383
        %1909 = vmatpush1.bf16.msra.mxu0 %v1382
        %1910 = vmatprep.subr.bf16.mxu0 %v1443
        %1911 = vmatpush2.bf16.msra.mxu0 %v1442
        %1912 = vmatprep.subr.bf16.mxu0 %v1439
        %1913 = vmatpush2.bf16.msra.mxu0 %v1438
        %1914 = vmatprep.subr.bf16.mxu0 %v1435
        %1915 = vmatpush2.bf16.msra.mxu0 %v1434
        %1916 = vmatprep.subr.bf16.mxu0 %v1431
        %1917 = vmatpush2.bf16.msra.mxu0 %v1430
        %1918 = vmatprep.subr.bf16.mxu0 %v1427
        %1919 = vmatpush2.bf16.msra.mxu0 %v1426
        %1920 = vmatprep.subr.bf16.mxu0 %v1423
        %1921 = vmatpush2.bf16.msra.mxu0 %v1422
        %1922 = vmatprep.subr.bf16.mxu0 %v1419
        %1923 = vmatpush2.bf16.msra.mxu0 %v1418
        %1924 = vmatprep.subr.bf16.mxu0 %v1415
        %1925 = vmatpush2.bf16.msra.mxu0 %v1414
        %1926 = vmatprep.mubr.bf16.mxu0 %v351
        %1927 = vmatmul.mubr.bf16.gmra.mxu0 %v350
        %v1928 = vpop.f32.mrf.mxu0
        %v1929 = vadd.f32 0.0, %v1928
        %v1930 = vpop.f32.mrf.mxu0
        %v1931 = vadd.f32 0.0, %v1930
        %v1932 = vpop.f32.mrf.mxu0
        %v1933 = vpop.f32.mrf.mxu0
        %1934 = vdwg.mxu0
        %1935 = vmatprep.subr.bf16.mxu0 %v1475
        %1936 = vmatpush1.bf16.msra.mxu0 %v1474
        %1937 = vmatprep.subr.bf16.mxu0 %v1471
        %1938 = vmatpush1.bf16.msra.mxu0 %v1470
        %1939 = vmatprep.subr.bf16.mxu0 %v1467
        %1940 = vmatpush1.bf16.msra.mxu0 %v1466
        %1941 = vmatprep.subr.bf16.mxu0 %v1463
        %1942 = vmatpush1.bf16.msra.mxu0 %v1462
        %1943 = vmatprep.subr.bf16.mxu0 %v1459
        %1944 = vmatpush1.bf16.msra.mxu0 %v1458
        %1945 = vmatprep.subr.bf16.mxu0 %v1455
        %1946 = vmatpush1.bf16.msra.mxu0 %v1454
        %1947 = vmatprep.subr.bf16.mxu0 %v1451
        %1948 = vmatpush1.bf16.msra.mxu0 %v1450
        %1949 = vmatprep.subr.bf16.mxu0 %v1447
        %1950 = vmatpush1.bf16.msra.mxu0 %v1446
        %1951 = vmatprep.subr.bf16.mxu0 %v1507
        %1952 = vmatpush2.bf16.msra.mxu0 %v1506
        %1953 = vmatprep.subr.bf16.mxu0 %v1503
        %1954 = vmatpush2.bf16.msra.mxu0 %v1502
        %1955 = vmatprep.subr.bf16.mxu0 %v1499
        %1956 = vmatpush2.bf16.msra.mxu0 %v1498
        %1957 = vmatprep.subr.bf16.mxu0 %v1495
        %1958 = vmatpush2.bf16.msra.mxu0 %v1494
        %1959 = vmatprep.subr.bf16.mxu0 %v1491
        %1960 = vmatpush2.bf16.msra.mxu0 %v1490
        %1961 = vmatprep.subr.bf16.mxu0 %v1487
        %1962 = vmatpush2.bf16.msra.mxu0 %v1486
        %1963 = vmatprep.subr.bf16.mxu0 %v1483
        %1964 = vmatpush2.bf16.msra.mxu0 %v1482
        %1965 = vmatprep.subr.bf16.mxu0 %v1479
        %1966 = vmatpush2.bf16.msra.mxu0 %v1478
        %1967 = vmatprep.mubr.bf16.mxu0 %v353
        %1968 = vmatmul.mubr.bf16.gmra.mxu0 %v352
        %v1969 = vpop.f32.mrf.mxu0
        %v1970 = vadd.f32 %v1929, %v1969
        %v1971 = vpop.f32.mrf.mxu0
        %v1972 = vadd.f32 %v1931, %v1971
        %v1973 = vpop.f32.mrf.mxu0
        %v1974 = vpop.f32.mrf.mxu0
        %1975 = vdwg.mxu0
        %1976 = vmatprep.subr.bf16.mxu0 %v1539
        %1977 = vmatpush1.bf16.msra.mxu0 %v1538
        %1978 = vmatprep.subr.bf16.mxu0 %v1535
        %1979 = vmatpush1.bf16.msra.mxu0 %v1534
        %1980 = vmatprep.subr.bf16.mxu0 %v1531
        %1981 = vmatpush1.bf16.msra.mxu0 %v1530
        %1982 = vmatprep.subr.bf16.mxu0 %v1527
        %1983 = vmatpush1.bf16.msra.mxu0 %v1526
        %1984 = vmatprep.subr.bf16.mxu0 %v1523
        %1985 = vmatpush1.bf16.msra.mxu0 %v1522
        %1986 = vmatprep.subr.bf16.mxu0 %v1519
        %1987 = vmatpush1.bf16.msra.mxu0 %v1518
        %1988 = vmatprep.subr.bf16.mxu0 %v1515
        %1989 = vmatpush1.bf16.msra.mxu0 %v1514
        %1990 = vmatprep.subr.bf16.mxu0 %v1511
        %1991 = vmatpush1.bf16.msra.mxu0 %v1510
        %1992 = vmatprep.subr.bf16.mxu0 %v1571
        %1993 = vmatpush2.bf16.msra.mxu0 %v1570
        %1994 = vmatprep.subr.bf16.mxu0 %v1567
        %1995 = vmatpush2.bf16.msra.mxu0 %v1566
        %1996 = vmatprep.subr.bf16.mxu0 %v1563
        %1997 = vmatpush2.bf16.msra.mxu0 %v1562
        %1998 = vmatprep.subr.bf16.mxu0 %v1559
        %1999 = vmatpush2.bf16.msra.mxu0 %v1558
        %2000 = vmatprep.subr.bf16.mxu0 %v1555
        %2001 = vmatpush2.bf16.msra.mxu0 %v1554
        %2002 = vmatprep.subr.bf16.mxu0 %v1551
        %2003 = vmatpush2.bf16.msra.mxu0 %v1550
        %2004 = vmatprep.subr.bf16.mxu0 %v1547
        %2005 = vmatpush2.bf16.msra.mxu0 %v1546
        %2006 = vmatprep.subr.bf16.mxu0 %v1543
        %2007 = vmatpush2.bf16.msra.mxu0 %v1542
        %2008 = vmatprep.mubr.bf16.mxu0 %v355
        %2009 = vmatmul.mubr.bf16.gmra.mxu0 %v354
        %v2010 = vpop.f32.mrf.mxu0
        %v2011 = vadd.f32 %v1970, %v2010
        %v2012 = vpop.f32.mrf.mxu0
        %v2013 = vadd.f32 %v1972, %v2012
        %v2014 = vpop.f32.mrf.mxu0
        %v2015 = vpop.f32.mrf.mxu0
        %2016 = vdwg.mxu0
        %2017 = vmatprep.subr.bf16.mxu0 %v1603
        %2018 = vmatpush1.bf16.msra.mxu0 %v1602
        %2019 = vmatprep.subr.bf16.mxu0 %v1599
        %2020 = vmatpush1.bf16.msra.mxu0 %v1598
        %2021 = vmatprep.subr.bf16.mxu0 %v1595
        %2022 = vmatpush1.bf16.msra.mxu0 %v1594
        %2023 = vmatprep.subr.bf16.mxu0 %v1591
        %2024 = vmatpush1.bf16.msra.mxu0 %v1590
        %2025 = vmatprep.subr.bf16.mxu0 %v1587
        %2026 = vmatpush1.bf16.msra.mxu0 %v1586
        %2027 = vmatprep.subr.bf16.mxu0 %v1583
        %2028 = vmatpush1.bf16.msra.mxu0 %v1582
        %2029 = vmatprep.subr.bf16.mxu0 %v1579
        %2030 = vmatpush1.bf16.msra.mxu0 %v1578
        %2031 = vmatprep.subr.bf16.mxu0 %v1575
        %2032 = vmatpush1.bf16.msra.mxu0 %v1574
        %2033 = vmatprep.subr.bf16.mxu0 %v1635
        %2034 = vmatpush2.bf16.msra.mxu0 %v1634
        %2035 = vmatprep.subr.bf16.mxu0 %v1631
        %2036 = vmatpush2.bf16.msra.mxu0 %v1630
        %2037 = vmatprep.subr.bf16.mxu0 %v1627
        %2038 = vmatpush2.bf16.msra.mxu0 %v1626
        %2039 = vmatprep.subr.bf16.mxu0 %v1623
        %2040 = vmatpush2.bf16.msra.mxu0 %v1622
        %2041 = vmatprep.subr.bf16.mxu0 %v1619
        %2042 = vmatpush2.bf16.msra.mxu0 %v1618
        %2043 = vmatprep.subr.bf16.mxu0 %v1615
        %2044 = vmatpush2.bf16.msra.mxu0 %v1614
        %2045 = vmatprep.subr.bf16.mxu0 %v1611
        %2046 = vmatpush2.bf16.msra.mxu0 %v1610
        %2047 = vmatprep.subr.bf16.mxu0 %v1607
        %2048 = vmatpush2.bf16.msra.mxu0 %v1606
        %2049 = vmatprep.mubr.bf16.mxu0 %v357
        %2050 = vmatmul.mubr.bf16.gmra.mxu0 %v356
        %v2051 = vpop.f32.mrf.mxu0
        %v2052 = vadd.f32 %v2011, %v2051
        %v2053 = vpop.f32.mrf.mxu0
        %v2054 = vadd.f32 %v2013, %v2053
        %v2055 = vpop.f32.mrf.mxu0
        %v2056 = vpop.f32.mrf.mxu0
        %2057 = vdwg.mxu0
        %2058 = vmatprep.subr.bf16.mxu0 %v1413
        %2059 = vmatpush1.bf16.msra.mxu0 %v1412
        %2060 = vmatprep.subr.bf16.mxu0 %v1409
        %2061 = vmatpush1.bf16.msra.mxu0 %v1408
        %2062 = vmatprep.subr.bf16.mxu0 %v1405
        %2063 = vmatpush1.bf16.msra.mxu0 %v1404
        %2064 = vmatprep.subr.bf16.mxu0 %v1401
        %2065 = vmatpush1.bf16.msra.mxu0 %v1400
        %2066 = vmatprep.subr.bf16.mxu0 %v1397
        %2067 = vmatpush1.bf16.msra.mxu0 %v1396
        %2068 = vmatprep.subr.bf16.mxu0 %v1393
        %2069 = vmatpush1.bf16.msra.mxu0 %v1392
        %2070 = vmatprep.subr.bf16.mxu0 %v1389
        %2071 = vmatpush1.bf16.msra.mxu0 %v1388
        %2072 = vmatprep.subr.bf16.mxu0 %v1385
        %2073 = vmatpush1.bf16.msra.mxu0 %v1384
        %2074 = vmatprep.subr.bf16.mxu0 %v1445
        %2075 = vmatpush2.bf16.msra.mxu0 %v1444
        %2076 = vmatprep.subr.bf16.mxu0 %v1441
        %2077 = vmatpush2.bf16.msra.mxu0 %v1440
        %2078 = vmatprep.subr.bf16.mxu0 %v1437
        %2079 = vmatpush2.bf16.msra.mxu0 %v1436
        %2080 = vmatprep.subr.bf16.mxu0 %v1433
        %2081 = vmatpush2.bf16.msra.mxu0 %v1432
        %2082 = vmatprep.subr.bf16.mxu0 %v1429
        %2083 = vmatpush2.bf16.msra.mxu0 %v1428
        %2084 = vmatprep.subr.bf16.mxu0 %v1425
        %2085 = vmatpush2.bf16.msra.mxu0 %v1424
        %2086 = vmatprep.subr.bf16.mxu0 %v1421
        %2087 = vmatpush2.bf16.msra.mxu0 %v1420
        %2088 = vmatprep.subr.bf16.mxu0 %v1417
        %2089 = vmatpush2.bf16.msra.mxu0 %v1416
        %2090 = vmatprep.mubr.bf16.mxu0 %v351
        %2091 = vmatmul.mubr.bf16.gmra.mxu0 %v350
        %v2092 = vpop.f32.mrf.mxu0
        %v2093 = vadd.f32 0.0, %v2092
        %v2094 = vpop.f32.mrf.mxu0
        %v2095 = vadd.f32 0.0, %v2094
        %v2096 = vpop.f32.mrf.mxu0
        %v2097 = vpop.f32.mrf.mxu0
        %2098 = vdwg.mxu0
        %2099 = vmatprep.subr.bf16.mxu0 %v1477
        %2100 = vmatpush1.bf16.msra.mxu0 %v1476
        %2101 = vmatprep.subr.bf16.mxu0 %v1473
        %2102 = vmatpush1.bf16.msra.mxu0 %v1472
        %2103 = vmatprep.subr.bf16.mxu0 %v1469
        %2104 = vmatpush1.bf16.msra.mxu0 %v1468
        %2105 = vmatprep.subr.bf16.mxu0 %v1465
        %2106 = vmatpush1.bf16.msra.mxu0 %v1464
        %2107 = vmatprep.subr.bf16.mxu0 %v1461
        %2108 = vmatpush1.bf16.msra.mxu0 %v1460
        %2109 = vmatprep.subr.bf16.mxu0 %v1457
        %2110 = vmatpush1.bf16.msra.mxu0 %v1456
        %2111 = vmatprep.subr.bf16.mxu0 %v1453
        %2112 = vmatpush1.bf16.msra.mxu0 %v1452
        %2113 = vmatprep.subr.bf16.mxu0 %v1449
        %2114 = vmatpush1.bf16.msra.mxu0 %v1448
        %2115 = vmatprep.subr.bf16.mxu0 %v1509
        %2116 = vmatpush2.bf16.msra.mxu0 %v1508
        %2117 = vmatprep.subr.bf16.mxu0 %v1505
        %2118 = vmatpush2.bf16.msra.mxu0 %v1504
        %2119 = vmatprep.subr.bf16.mxu0 %v1501
        %2120 = vmatpush2.bf16.msra.mxu0 %v1500
        %2121 = vmatprep.subr.bf16.mxu0 %v1497
        %2122 = vmatpush2.bf16.msra.mxu0 %v1496
        %2123 = vmatprep.subr.bf16.mxu0 %v1493
        %2124 = vmatpush2.bf16.msra.mxu0 %v1492
        %2125 = vmatprep.subr.bf16.mxu0 %v1489
        %2126 = vmatpush2.bf16.msra.mxu0 %v1488
        %2127 = vmatprep.subr.bf16.mxu0 %v1485
        %2128 = vmatpush2.bf16.msra.mxu0 %v1484
        %2129 = vmatprep.subr.bf16.mxu0 %v1481
        %2130 = vmatpush2.bf16.msra.mxu0 %v1480
        %2131 = vmatprep.mubr.bf16.mxu0 %v353
        %2132 = vmatmul.mubr.bf16.gmra.mxu0 %v352
        %v2133 = vpop.f32.mrf.mxu0
        %v2134 = vadd.f32 %v2093, %v2133
        %v2135 = vpop.f32.mrf.mxu0
        %v2136 = vadd.f32 %v2095, %v2135
        %v2137 = vpop.f32.mrf.mxu0
        %v2138 = vpop.f32.mrf.mxu0
        %2139 = vdwg.mxu0
        %2140 = vmatprep.subr.bf16.mxu0 %v1541
        %2141 = vmatpush1.bf16.msra.mxu0 %v1540
        %2142 = vmatprep.subr.bf16.mxu0 %v1537
        %2143 = vmatpush1.bf16.msra.mxu0 %v1536
        %2144 = vmatprep.subr.bf16.mxu0 %v1533
        %2145 = vmatpush1.bf16.msra.mxu0 %v1532
        %2146 = vmatprep.subr.bf16.mxu0 %v1529
        %2147 = vmatpush1.bf16.msra.mxu0 %v1528
        %2148 = vmatprep.subr.bf16.mxu0 %v1525
        %2149 = vmatpush1.bf16.msra.mxu0 %v1524
        %2150 = vmatprep.subr.bf16.mxu0 %v1521
        %2151 = vmatpush1.bf16.msra.mxu0 %v1520
        %2152 = vmatprep.subr.bf16.mxu0 %v1517
        %2153 = vmatpush1.bf16.msra.mxu0 %v1516
        %2154 = vmatprep.subr.bf16.mxu0 %v1513
        %2155 = vmatpush1.bf16.msra.mxu0 %v1512
        %2156 = vmatprep.subr.bf16.mxu0 %v1573
        %2157 = vmatpush2.bf16.msra.mxu0 %v1572
        %2158 = vmatprep.subr.bf16.mxu0 %v1569
        %2159 = vmatpush2.bf16.msra.mxu0 %v1568
        %2160 = vmatprep.subr.bf16.mxu0 %v1565
        %2161 = vmatpush2.bf16.msra.mxu0 %v1564
        %2162 = vmatprep.subr.bf16.mxu0 %v1561
        %2163 = vmatpush2.bf16.msra.mxu0 %v1560
        %2164 = vmatprep.subr.bf16.mxu0 %v1557
        %2165 = vmatpush2.bf16.msra.mxu0 %v1556
        %2166 = vmatprep.subr.bf16.mxu0 %v1553
        %2167 = vmatpush2.bf16.msra.mxu0 %v1552
        %2168 = vmatprep.subr.bf16.mxu0 %v1549
        %2169 = vmatpush2.bf16.msra.mxu0 %v1548
        %2170 = vmatprep.subr.bf16.mxu0 %v1545
        %2171 = vmatpush2.bf16.msra.mxu0 %v1544
        %2172 = vmatprep.mubr.bf16.mxu0 %v355
        %2173 = vmatmul.mubr.bf16.gmra.mxu0 %v354
        %v2174 = vpop.f32.mrf.mxu0
        %v2175 = vadd.f32 %v2134, %v2174
        %v2176 = vpop.f32.mrf.mxu0
        %v2177 = vadd.f32 %v2136, %v2176
        %v2178 = vpop.f32.mrf.mxu0
        %v2179 = vpop.f32.mrf.mxu0
        %2180 = vdwg.mxu0
        %2181 = vmatprep.subr.bf16.mxu0 %v1605
        %2182 = vmatpush1.bf16.msra.mxu0 %v1604
        %2183 = vmatprep.subr.bf16.mxu0 %v1601
        %2184 = vmatpush1.bf16.msra.mxu0 %v1600
        %2185 = vmatprep.subr.bf16.mxu0 %v1597
        %2186 = vmatpush1.bf16.msra.mxu0 %v1596
        %2187 = vmatprep.subr.bf16.mxu0 %v1593
        %2188 = vmatpush1.bf16.msra.mxu0 %v1592
        %2189 = vmatprep.subr.bf16.mxu0 %v1589
        %2190 = vmatpush1.bf16.msra.mxu0 %v1588
        %2191 = vmatprep.subr.bf16.mxu0 %v1585
        %2192 = vmatpush1.bf16.msra.mxu0 %v1584
        %2193 = vmatprep.subr.bf16.mxu0 %v1581
        %2194 = vmatpush1.bf16.msra.mxu0 %v1580
        %2195 = vmatprep.subr.bf16.mxu0 %v1577
        %2196 = vmatpush1.bf16.msra.mxu0 %v1576
        %2197 = vmatprep.subr.bf16.mxu0 %v1637
        %2198 = vmatpush2.bf16.msra.mxu0 %v1636
        %2199 = vmatprep.subr.bf16.mxu0 %v1633
        %2200 = vmatpush2.bf16.msra.mxu0 %v1632
        %2201 = vmatprep.subr.bf16.mxu0 %v1629
        %2202 = vmatpush2.bf16.msra.mxu0 %v1628
        %2203 = vmatprep.subr.bf16.mxu0 %v1625
        %2204 = vmatpush2.bf16.msra.mxu0 %v1624
        %2205 = vmatprep.subr.bf16.mxu0 %v1621
        %2206 = vmatpush2.bf16.msra.mxu0 %v1620
        %2207 = vmatprep.subr.bf16.mxu0 %v1617
        %2208 = vmatpush2.bf16.msra.mxu0 %v1616
        %2209 = vmatprep.subr.bf16.mxu0 %v1613
        %2210 = vmatpush2.bf16.msra.mxu0 %v1612
        %2211 = vmatprep.subr.bf16.mxu0 %v1609
        %2212 = vmatpush2.bf16.msra.mxu0 %v1608
        %2213 = vmatprep.mubr.bf16.mxu0 %v357
        %2214 = vmatmul.mubr.bf16.gmra.mxu0 %v356
        %v2215 = vpop.f32.mrf.mxu0
        %v2216 = vadd.f32 %v2175, %v2215
        %v2217 = vpop.f32.mrf.mxu0
        %v2218 = vadd.f32 %v2177, %v2217
        %v2219 = vpop.f32.mrf.mxu0
        %v2220 = vpop.f32.mrf.mxu0
        %2221 = vdwg.mxu0
        %v2222 = vmul.f32 %v2052, 0.01
        %v2223 = vmul.f32 %v2054, 0.01
        %v2224 = vmul.f32 %v2216, 0.01
        %v2225 = vmul.f32 %v2218, 0.01
        %v2226 = vadd.f32 %v2222, %v288
        %v2227 = vadd.f32 %v2223, %v288
        %v2228 = vadd.f32 %v2224, %v288
        %v2229 = vadd.f32 %v2225, %v288
        %s2230 = smul.u32 %s18, 512
        %s2231 = sshra.s32 %s2230, 7
        %s2232 = sand.u32 %s2230, 127
        %s2233 = smul.addr %s2231, 2
        %s2234 = scalar_lea.vmem %s0, %s2233
        %v2235 = vld [vmem:[%s2234] sm:$0xff]
        %s2236 = smul.addr %s2231, 2
        %s2237 = scalar_lea.vmem %s1, %s2236
        %v2238 = vld [vmem:[%s2237] sm:$0xff]
        %v2239 = vmul.f32 %v2235, 2.0
        %v2240 = vsub.f32 %v2239, 1.0
        %v2241 = vsub.f32 %v2238, %v2240
        %v2246 = vcombine.low %v2226, %v2227
        %v2247 = vcombine.low %v2228, %v2229
        %v2249 = vunpack.c.l.s4 1983009808
        %v2250 = vunpack.c.0.s8 %v2249
        %v2251 = vlaneseq
        %v2252 = vshrl.u32 %v2251, 7
        %v2253 = vsub.s32 %v2250, %v2252
        %v2254 = vrot.slane %v2246, %v2253
        %v2256 = vunpack.c.l.s4 1983009808
        %v2257 = vunpack.c.0.s8 %v2256
        %v2258 = vlaneseq
        %v2259 = vshrl.u32 %v2258, 7
        %v2260 = vsub.s32 %v2257, %v2259
        %v2261 = vrot.slane %v2247, %v2260
        %v2262 = vcombine.low %v2254, %v2261
        %v2264 = vsub.f32 %v2241, %v2262
        %v2265 = vmul.f32 %v2264, %v2264
        %v2267 = vcombine.high %v2265, %v2265
        %v2269 = vunpack.c.l.s4 1983009808
        %v2270 = vunpack.c.0.s8 %v2269
        %v2271 = vlaneseq
        %v2272 = vshrl.u32 %v2271, 7
        %v2273 = vsub.s32 %v2270, %v2272
        %v2274 = vrot.slane %v2265, %v2273
        %v2276 = vunpack.c.l.s4 1983009808
        %v2277 = vunpack.c.0.s8 %v2276
        %v2278 = vlaneseq
        %v2279 = vshrl.u32 %v2278, 7
        %v2280 = vsub.s32 %v2277, %v2279
        %v2281 = vrot.slane %v2267, %v2280
        %v2282 = vcombine.high %v2274, %v2274
        %v2283 = vcombine.high %v2281, %v2281
        %vm2288 = vcmask 1041408
        %v2289 = vsel %vm2288, %v2274, 0.0
        %v2290 = vrot.slane %v2289, 4
        %v2291 = vadd.f32 %v2289, %v2290
        %v2292 = vrot.slane %v2291, 2
        %v2293 = vadd.f32 %v2291, %v2292
        %v2294 = vrot.slane %v2293, 1
        %v2295 = vadd.f32 %v2293, %v2294
        %v2296 = vsel %vm2288, %v2282, 0.0
        %v2297 = vrot.slane %v2296, 4
        %v2298 = vadd.f32 %v2296, %v2297
        %v2299 = vrot.slane %v2298, 2
        %v2300 = vadd.f32 %v2298, %v2299
        %v2301 = vrot.slane %v2300, 1
        %v2302 = vadd.f32 %v2300, %v2301
        %v2303 = vsel %vm2288, %v2281, 0.0
        %v2304 = vrot.slane %v2303, 4
        %v2305 = vadd.f32 %v2303, %v2304
        %v2306 = vrot.slane %v2305, 2
        %v2307 = vadd.f32 %v2305, %v2306
        %v2308 = vrot.slane %v2307, 1
        %v2309 = vadd.f32 %v2307, %v2308
        %v2310 = vsel %vm2288, %v2283, 0.0
        %v2311 = vrot.slane %v2310, 4
        %v2312 = vadd.f32 %v2310, %v2311
        %v2313 = vrot.slane %v2312, 2
        %v2314 = vadd.f32 %v2312, %v2313
        %v2315 = vrot.slane %v2314, 1
        %v2316 = vadd.f32 %v2314, %v2315
        %v2321 = vcombine.low %v2295, %v2302
        %v2322 = vcombine.low %v2309, %v2316
        %v2324 = vunpack.c.l.s4 1966171168
        %v2325 = vunpack.c.0.s8 %v2324
        %v2326 = vlaneseq
        %v2327 = vshrl.u32 %v2326, 7
        %v2328 = vsub.s32 %v2325, %v2327
        %v2329 = vrot.slane %v2321, %v2328
        %v2331 = vunpack.c.l.s4 1966171168
        %v2332 = vunpack.c.0.s8 %v2331
        %v2333 = vlaneseq
        %v2334 = vshrl.u32 %v2333, 7
        %v2335 = vsub.s32 %v2332, %v2334
        %v2336 = vrot.slane %v2322, %v2335
        %v2337 = vcombine.low %v2329, %v2336
        %v2339 = vunpack.c.l.s4 1966171168
        %v2340 = vunpack.c.0.s8 %v2339
        %v2341 = vlaneseq
        %v2342 = vshrl.u32 %v2341, 7
        %v2343 = vsub.s32 %v2340, %v2342
        %v2344 = vrot.slane %v2337, %v2343
        %v2346 = vlaneseq
        %vm2347 = vcmp.ge.s32.totalorder %v2346, 0
        %vm2348 = vcmp.lt.s32.totalorder %v2346, 512
        %vm2349 = vmand %vm2347, %vm2348
        %2350 = vst.msk [vmem:[%s216] sm:$0xf] %vm2349, %v2344
        %s2351 = smul.u32 4, %s18
        %p2352 = scmp.lt.s32.totalorder %s2351, 7
        %s2353 = scalar_select %p2352, %s2351, 7
        %s2354 = scalar_lea.vmem %s4, %s2353
        // Predicated region
        $region41: #{rectified_flow_loss.1} parent=35 // pred_check
          %p2355 = pneg %p125
        $region42: #{rectified_flow_loss.1} parent=35 // pred_check_branch
          %2357 = sbr.rel (%p2355) target = $region44
        $region43: #{rectified_flow_loss.1} parent=35 // pred_region
          %s2358 = smul.u32 4, %s18
        $region44: #{rectified_flow_loss.1} parent=35 // pred_fallthru
          _
      $region36: #{rectified_flow_loss.1} parent=5 // pred_fallthru
        _
      %p2359 = scmp.le.s32.totalorder 2, %s13
      // Predicated region
      $region45: #{rectified_flow_loss.1} parent=5 // pred_check
        %p2360 = pneg %p2359
      $region46: #{rectified_flow_loss.1} parent=5 // pred_check_branch
        %2362 = sbr.rel (%p2360) target = $region48
      $region47: #{rectified_flow_loss.1} parent=5 // pred_region
        %s2363 = ssub.s32 %s13, 2
        // Predicated region
        $region49: #{rectified_flow_loss.1} parent=47 // pred_check
          %p2364 = pneg %p131
        $region50: #{rectified_flow_loss.1} parent=47 // pred_check_branch
          %2366 = sbr.rel (%p2364) target = $region52
        $region51: #{rectified_flow_loss.1} parent=47 // pred_region
          %s2367 = smul.u32 4, %s19
          %p2368 = scmp.lt.s32.totalorder %s2367, 7
          %s2369 = scalar_select %p2368, %s2367, 7
          %s2370 = scalar_lea.vmem %s4, %s2369
        $region52: #{rectified_flow_loss.1} parent=47 // pred_fallthru
          _
      $region48: #{rectified_flow_loss.1} parent=5 // pred_fallthru
        _
    $region6: #{rectified_flow_loss.1} parent=1 // loop_footer
      %s17 = sadd.s32 1, %s13
    $region7: #{rectified_flow_loss.1} parent=1 // loop_footer_branch
      %12 = sbr.rel target = $region3
    $region8: #{rectified_flow_loss.1} parent=1 // loop_exit
      _
    %2371 = vsyncpa [#allocation3], 1
    %s2372 = scalar_lea.sflag [#allocation3], 1
    %2373 = vsyncpa %s2372, 1

</llo_original>
